<compile_context>
chip_gen: v7x
topology: tpu7x:2x2x1
jax: 0.10.0
libtpu: 0.0.40
codegen_flags: <defaults>
</compile_context>

<pallas_src>
import functools

import jax
import jax.numpy as jnp
from jax import lax
from jax.experimental import pallas as pl
from jax.experimental.pallas import tpu as pltpu


def lstm_ner_kernel(emb_ref, wih_ref, whh_ref, b_ref, wfc_ref, bfc_ref,
                    out_ref, hs_sc, *, seq_len, batch):
    """Whole forward (input proj -> LSTM recurrence -> final Linear) in one invocation.

    emb_ref : (S*B, E)  time-major flattened embeddings
    wih_ref : (E, 4H)   input->gates weight (pre-transposed)
    whh_ref : (H, 4H)   hidden->gates weight (pre-transposed)
    b_ref   : (1, 4H)   b_ih + b_hh
    wfc_ref : (H, T)    final linear weight (pre-transposed)
    bfc_ref : (1, T)    final linear bias
    out_ref : (S*B, T)  time-major flattened logits
    hs_sc   : (S*B, H)  VMEM scratch collecting h_t for all timesteps
    """
    H = whh_ref.shape[0]

    # Phase 1: hoisted input projection for all timesteps -> one big MXU matmul.
    gx = (jnp.dot(emb_ref[...], wih_ref[...], preferred_element_type=jnp.float32)
          + b_ref[...])                                  # (S*B, 4H), lives in vregs

    # Phase 2: sequential recurrence. h/c carried as values; loop statically unrolled.
    h = jnp.zeros((batch, H), jnp.float32)
    c = jnp.zeros((batch, H), jnp.float32)
    for t in range(seq_len):                             # S is small & static
        gates = (gx[t * batch:(t + 1) * batch, :]
                 + jnp.dot(h, whh_ref[...], preferred_element_type=jnp.float32))
        # PyTorch gate order: i, f, g, o.  With H=128 each slice is a full vreg lane span.
        i_g = jax.nn.sigmoid(gates[:, 0 * H:1 * H])
        f_g = jax.nn.sigmoid(gates[:, 1 * H:2 * H])
        g_g = jnp.tanh(gates[:, 2 * H:3 * H])
        o_g = jax.nn.sigmoid(gates[:, 3 * H:4 * H])
        c = f_g * c + i_g * g_g
        h = o_g * jnp.tanh(c)
        hs_sc[t * batch:(t + 1) * batch, :] = h          # H-wide VMEM store, static slice

    # Phase 3: hoisted final Linear -> one matmul + one output store.
    out_ref[...] = (jnp.dot(hs_sc[...], wfc_ref[...], preferred_element_type=jnp.float32)
                    + bfc_ref[...]).astype(out_ref.dtype)


def lstm_ner_forward(x_ids, params):
    """Pallas forward pass matching LSTM_NER.forward (batch_first=True)."""
    emb_table = params["embedding"]       # (V, E), row 0 is padding
    w_ih = params["w_ih"]                 # (4H, E)  torch layout
    w_hh = params["w_hh"]                 # (4H, H)
    b_ih = params["b_ih"]                 # (4H,)
    b_hh = params["b_hh"]                 # (4H,)
    w_fc = params["w_fc"]                 # (T, H)
    b_fc = params["b_fc"]                 # (T,)

    B, S = x_ids.shape
    E = emb_table.shape[1]
    H = w_hh.shape[1]
    T = w_fc.shape[0]

    # Embedding lookup (XLA glue), then time-major flattened layout for the kernel.
    emb = jnp.take(emb_table, x_ids, axis=0)             # (B, S, E)
    emb_tm = jnp.transpose(emb, (1, 0, 2)).reshape(S * B, E)   # (S*B, E)

    wih_t = jnp.transpose(w_ih)                          # (E, 4H)
    whh_t = jnp.transpose(w_hh)                          # (H, 4H)
    b_all = (b_ih + b_hh)[None, :]                       # (1, 4H)
    wfc_t = jnp.transpose(w_fc)                          # (H, T)
    bfc_r = b_fc[None, :]                                # (1, T)

    kernel = functools.partial(lstm_ner_kernel, seq_len=S, batch=B)

    grid_spec = pltpu.PrefetchScalarGridSpec(
        num_scalar_prefetch=0,
        grid=(1,),                                       # single invocation: no per-step grid overhead
        in_specs=[
            pl.BlockSpec((S * B, E), lambda i: (0, 0)),      # all embeddings (whole)
            pl.BlockSpec((E, 4 * H), lambda i: (0, 0)),      # W_ih^T (whole)
            pl.BlockSpec((H, 4 * H), lambda i: (0, 0)),      # W_hh^T (whole)
            pl.BlockSpec((1, 4 * H), lambda i: (0, 0)),      # combined bias
            pl.BlockSpec((H, T), lambda i: (0, 0)),          # W_fc^T (whole)
            pl.BlockSpec((1, T), lambda i: (0, 0)),          # fc bias
        ],
        out_specs=pl.BlockSpec((S * B, T), lambda i: (0, 0)),
        scratch_shapes=[
            pltpu.VMEM((S * B, H), jnp.float32),             # hidden states for all steps
        ],
    )

    out2d = pl.pallas_call(
        kernel,
        out_shape=jax.ShapeDtypeStruct((S * B, T), jnp.float32),
        grid_spec=grid_spec,
        compiler_params=pltpu.CompilerParams(
            dimension_semantics=("arbitrary",)),
    )(emb_tm, wih_t, whh_t, b_all, wfc_t, bfc_r)

    # Back to PyTorch batch_first layout.
    return jnp.transpose(out2d.reshape(S, B, T), (1, 0, 2))   # (B, S, T)


def lstm_ner_reference(x_ids, params):
    """Pure-JAX reference mirroring PyTorch LSTM semantics (for verification)."""
    emb = jnp.take(params["embedding"], x_ids, axis=0)   # (B, S, E)
    B, S, E = emb.shape
    H = params["w_hh"].shape[1]
    wih_t = params["w_ih"].T
    whh_t = params["w_hh"].T
    b_all = params["b_ih"] + params["b_hh"]

    def step(carry, x_t):
        h, c = carry
        gates = x_t @ wih_t + h @ whh_t + b_all
        i = jax.nn.sigmoid(gates[:, 0 * H:1 * H])
        f = jax.nn.sigmoid(gates[:, 1 * H:2 * H])
        g = jnp.tanh(gates[:, 2 * H:3 * H])
        o = jax.nn.sigmoid(gates[:, 3 * H:4 * H])
        c = f * c + i * g
        h = o * jnp.tanh(c)
        return (h, c), h

    h0 = jnp.zeros((B, H), jnp.float32)
    c0 = jnp.zeros((B, H), jnp.float32)
    _, hs = lax.scan(step, (h0, c0), jnp.transpose(emb, (1, 0, 2)))
    hs = jnp.transpose(hs, (1, 0, 2))                     # (B, S, H)
    return hs @ params["w_fc"].T + params["b_fc"]


def init_params(key, vocab_size, tagset_size, embedding_dim, hidden_dim):
    ks = jax.random.split(key, 7)
    scale = 0.1
    emb = scale * jax.random.normal(ks[0], (vocab_size, embedding_dim), jnp.float32)
    emb = emb.at[0].set(0.0)   # padding_idx=0 row is zero (inference semantics)
    return {
        "embedding": emb,
        "w_ih": scale * jax.random.normal(ks[1], (4 * hidden_dim, embedding_dim), jnp.float32),
        "w_hh": scale * jax.random.normal(ks[2], (4 * hidden_dim, hidden_dim), jnp.float32),
        "b_ih": scale * jax.random.normal(ks[3], (4 * hidden_dim,), jnp.float32),
        "b_hh": scale * jax.random.normal(ks[4], (4 * hidden_dim,), jnp.float32),
        "w_fc": scale * jax.random.normal(ks[5], (tagset_size, hidden_dim), jnp.float32),
        "b_fc": scale * jax.random.normal(ks[6], (tagset_size,), jnp.float32),
    }


if __name__ == "__main__":
    # Small shapes consistent with the module defaults (embedding_dim=64, hidden_dim=128).
    VOCAB, TAGS = 50, 8
    EMB, HID = 64, 128
    B, S = 2, 8

    key = jax.random.PRNGKey(0)
    k_param, k_ids = jax.random.split(key)
    params = init_params(k_param, VOCAB, TAGS, EMB, HID)
    x_ids = jax.random.randint(k_ids, (B, S), 0, VOCAB, dtype=jnp.int32)

    logits = jax.block_until_ready(lstm_ner_forward(x_ids, params))
    ref = jax.block_until_ready(lstm_ner_reference(x_ids, params))

    assert logits.shape == (B, S, TAGS), logits.shape
    assert jnp.allclose(logits, ref, atol=1e-4, rtol=1e-4), "mismatch vs reference"
    print("KERNEL_OK")
</pallas_src>

<mosaic_0001>
module attributes {stable_mosaic.version = 11 : i64} {
  func.func @lstm_ner_kernel(%arg0: i32, %arg1: memref<16x64xf32, #tpu.memory_space<vmem>>, %arg2: memref<64x512xf32, #tpu.memory_space<vmem>>, %arg3: memref<128x512xf32, #tpu.memory_space<vmem>>, %arg4: memref<1x512xf32, #tpu.memory_space<vmem>>, %arg5: memref<128x8xf32, #tpu.memory_space<vmem>>, %arg6: memref<1x8xf32, #tpu.memory_space<vmem>>, %arg7: memref<16x8xf32, #tpu.memory_space<vmem>>, %arg8: memref<16x128xf32, #tpu.memory_space<vmem>>) attributes {dimension_semantics = [#tpu.dimension_semantics<arbitrary>], iteration_bounds = array<i64: 1>, scalar_prefetch = 0 : i64, scratch_operands = 1 : i64, tpu.core_type = #tpu.core_type<tc>, window_params = [{pipeline_mode = #tpu.pipeline_mode<synchronous>, transform_indices = @transform_0, window_bounds = array<i64: 16, 64>}, {pipeline_mode = #tpu.pipeline_mode<synchronous>, transform_indices = @transform_1, window_bounds = array<i64: 64, 512>}, {pipeline_mode = #tpu.pipeline_mode<synchronous>, transform_indices = @transform_2, window_bounds = array<i64: 128, 512>}, {pipeline_mode = #tpu.pipeline_mode<synchronous>, transform_indices = @transform_3, window_bounds = array<i64: 1, 512>}, {pipeline_mode = #tpu.pipeline_mode<synchronous>, transform_indices = @transform_4, window_bounds = array<i64: 128, 8>}, {pipeline_mode = #tpu.pipeline_mode<synchronous>, transform_indices = @transform_5, window_bounds = array<i64: 1, 8>}, {pipeline_mode = #tpu.pipeline_mode<synchronous>, transform_indices = @transform_6, window_bounds = array<i64: 16, 8>}]} {
    %c0 = arith.constant 0 : index
    %c0_0 = arith.constant 0 : index
    %0 = vector.load %arg1[%c0, %c0_0] : memref<16x64xf32, #tpu.memory_space<vmem>>, vector<16x64xf32>
    %c0_1 = arith.constant 0 : index
    %c0_2 = arith.constant 0 : index
    %1 = vector.load %arg2[%c0_1, %c0_2] : memref<64x512xf32, #tpu.memory_space<vmem>>, vector<64x512xf32>
    %cst = arith.constant dense<0.000000e+00> : vector<16x512xf32>
    %2 = tpu.matmul %0, %1, %cst {dimension_numbers = #tpu.dot_dimension_numbers<[1], [0], [0], [1], [0, 0, 1, 1], [], []>} : vector<16x64xf32>, vector<64x512xf32>, vector<16x512xf32> -> vector<16x512xf32>
    %c0_3 = arith.constant 0 : index
    %c0_4 = arith.constant 0 : index
    %3 = vector.load %arg4[%c0_3, %c0_4] : memref<1x512xf32, #tpu.memory_space<vmem>>, vector<1x512xf32>
    %4 = vector.broadcast %3 : vector<1x512xf32> to vector<16x512xf32>
    %5 = arith.addf %2, %4 : vector<16x512xf32>
    %cst_5 = arith.constant 0.000000e+00 : f32
    %6 = vector.broadcast %cst_5 : f32 to vector<2x128xf32>
    %cst_6 = arith.constant 0.000000e+00 : f32
    %7 = vector.broadcast %cst_6 : f32 to vector<2x128xf32>
    %8 = vector.extract_strided_slice %5 {offsets = [0, 0], sizes = [2, 512], strides = [1, 1]} : vector<16x512xf32> to vector<2x512xf32>
    %c0_7 = arith.constant 0 : index
    %c0_8 = arith.constant 0 : index
    %9 = vector.load %arg3[%c0_7, %c0_8] : memref<128x512xf32, #tpu.memory_space<vmem>>, vector<128x512xf32>
    %cst_9 = arith.constant dense<0.000000e+00> : vector<2x512xf32>
    %10 = tpu.matmul %6, %9, %cst_9 {dimension_numbers = #tpu.dot_dimension_numbers<[1], [0], [0], [1], [0, 0, 1, 1], [], []>} : vector<2x128xf32>, vector<128x512xf32>, vector<2x512xf32> -> vector<2x512xf32>
    %11 = arith.addf %8, %10 : vector<2x512xf32>
    %12 = vector.extract_strided_slice %11 {offsets = [0, 0], sizes = [2, 128], strides = [1, 1]} : vector<2x512xf32> to vector<2x128xf32>
    %13 = arith.negf %12 : vector<2x128xf32>
    %14 = math.exp %13 : vector<2x128xf32>
    %cst_10 = arith.constant 1.000000e+00 : f32
    %15 = vector.broadcast %cst_10 : f32 to vector<2x128xf32>
    %16 = arith.addf %15, %14 : vector<2x128xf32>
    %17 = arith.divf %15, %16 : vector<2x128xf32>
    %18 = vector.extract_strided_slice %11 {offsets = [0, 128], sizes = [2, 128], strides = [1, 1]} : vector<2x512xf32> to vector<2x128xf32>
    %19 = arith.negf %18 : vector<2x128xf32>
    %20 = math.exp %19 : vector<2x128xf32>
    %cst_11 = arith.constant 1.000000e+00 : f32
    %21 = vector.broadcast %cst_11 : f32 to vector<2x128xf32>
    %22 = arith.addf %21, %20 : vector<2x128xf32>
    %23 = arith.divf %21, %22 : vector<2x128xf32>
    %24 = vector.extract_strided_slice %11 {offsets = [0, 256], sizes = [2, 128], strides = [1, 1]} : vector<2x512xf32> to vector<2x128xf32>
    %25 = math.tanh %24 : vector<2x128xf32>
    %26 = vector.extract_strided_slice %11 {offsets = [0, 384], sizes = [2, 128], strides = [1, 1]} : vector<2x512xf32> to vector<2x128xf32>
    %27 = arith.negf %26 : vector<2x128xf32>
    %28 = math.exp %27 : vector<2x128xf32>
    %cst_12 = arith.constant 1.000000e+00 : f32
    %29 = vector.broadcast %cst_12 : f32 to vector<2x128xf32>
    %30 = arith.addf %29, %28 : vector<2x128xf32>
    %31 = arith.divf %29, %30 : vector<2x128xf32>
    %32 = arith.mulf %23, %7 : vector<2x128xf32>
    %33 = arith.mulf %17, %25 : vector<2x128xf32>
    %34 = arith.addf %32, %33 : vector<2x128xf32>
    %35 = math.tanh %34 : vector<2x128xf32>
    %36 = arith.mulf %31, %35 : vector<2x128xf32>
    %c0_13 = arith.constant 0 : index
    %c0_14 = arith.constant 0 : index
    %37 = vector.load %arg8[%c0_13, %c0_14] : memref<16x128xf32, #tpu.memory_space<vmem>>, vector<2x128xf32>
    tpu.vector_store %arg8[%c0_13, %c0_14], %36 {strides = array<i32>} : memref<16x128xf32, #tpu.memory_space<vmem>>, vector<2x128xf32>,
    %38 = vector.extract_strided_slice %5 {offsets = [2, 0], sizes = [2, 512], strides = [1, 1]} : vector<16x512xf32> to vector<2x512xf32>
    %c0_15 = arith.constant 0 : index
    %c0_16 = arith.constant 0 : index
    %39 = vector.load %arg3[%c0_15, %c0_16] : memref<128x512xf32, #tpu.memory_space<vmem>>, vector<128x512xf32>
    %cst_17 = arith.constant dense<0.000000e+00> : vector<2x512xf32>
    %40 = tpu.matmul %36, %39, %cst_17 {dimension_numbers = #tpu.dot_dimension_numbers<[1], [0], [0], [1], [0, 0, 1, 1], [], []>} : vector<2x128xf32>, vector<128x512xf32>, vector<2x512xf32> -> vector<2x512xf32>
    %41 = arith.addf %38, %40 : vector<2x512xf32>
    %42 = vector.extract_strided_slice %41 {offsets = [0, 0], sizes = [2, 128], strides = [1, 1]} : vector<2x512xf32> to vector<2x128xf32>
    %43 = arith.negf %42 : vector<2x128xf32>
    %44 = math.exp %43 : vector<2x128xf32>
    %cst_18 = arith.constant 1.000000e+00 : f32
    %45 = vector.broadcast %cst_18 : f32 to vector<2x128xf32>
    %46 = arith.addf %45, %44 : vector<2x128xf32>
    %47 = arith.divf %45, %46 : vector<2x128xf32>
    %48 = vector.extract_strided_slice %41 {offsets = [0, 128], sizes = [2, 128], strides = [1, 1]} : vector<2x512xf32> to vector<2x128xf32>
    %49 = arith.negf %48 : vector<2x128xf32>
    %50 = math.exp %49 : vector<2x128xf32>
    %cst_19 = arith.constant 1.000000e+00 : f32
    %51 = vector.broadcast %cst_19 : f32 to vector<2x128xf32>
    %52 = arith.addf %51, %50 : vector<2x128xf32>
    %53 = arith.divf %51, %52 : vector<2x128xf32>
    %54 = vector.extract_strided_slice %41 {offsets = [0, 256], sizes = [2, 128], strides = [1, 1]} : vector<2x512xf32> to vector<2x128xf32>
    %55 = math.tanh %54 : vector<2x128xf32>
    %56 = vector.extract_strided_slice %41 {offsets = [0, 384], sizes = [2, 128], strides = [1, 1]} : vector<2x512xf32> to vector<2x128xf32>
    %57 = arith.negf %56 : vector<2x128xf32>
    %58 = math.exp %57 : vector<2x128xf32>
    %cst_20 = arith.constant 1.000000e+00 : f32
    %59 = vector.broadcast %cst_20 : f32 to vector<2x128xf32>
    %60 = arith.addf %59, %58 : vector<2x128xf32>
    %61 = arith.divf %59, %60 : vector<2x128xf32>
    %62 = arith.mulf %53, %34 : vector<2x128xf32>
    %63 = arith.mulf %47, %55 : vector<2x128xf32>
    %64 = arith.addf %62, %63 : vector<2x128xf32>
    %65 = math.tanh %64 : vector<2x128xf32>
    %66 = arith.mulf %61, %65 : vector<2x128xf32>
    %c2 = arith.constant 2 : index
    %c0_21 = arith.constant 0 : index
    %67 = vector.load %arg8[%c2, %c0_21] : memref<16x128xf32, #tpu.memory_space<vmem>>, vector<2x128xf32>
    tpu.vector_store %arg8[%c2, %c0_21], %66 {strides = array<i32>} : memref<16x128xf32, #tpu.memory_space<vmem>>, vector<2x128xf32>,
    %68 = vector.extract_strided_slice %5 {offsets = [4, 0], sizes = [2, 512], strides = [1, 1]} : vector<16x512xf32> to vector<2x512xf32>
    %c0_22 = arith.constant 0 : index
    %c0_23 = arith.constant 0 : index
    %69 = vector.load %arg3[%c0_22, %c0_23] : memref<128x512xf32, #tpu.memory_space<vmem>>, vector<128x512xf32>
    %cst_24 = arith.constant dense<0.000000e+00> : vector<2x512xf32>
    %70 = tpu.matmul %66, %69, %cst_24 {dimension_numbers = #tpu.dot_dimension_numbers<[1], [0], [0], [1], [0, 0, 1, 1], [], []>} : vector<2x128xf32>, vector<128x512xf32>, vector<2x512xf32> -> vector<2x512xf32>
    %71 = arith.addf %68, %70 : vector<2x512xf32>
    %72 = vector.extract_strided_slice %71 {offsets = [0, 0], sizes = [2, 128], strides = [1, 1]} : vector<2x512xf32> to vector<2x128xf32>
    %73 = arith.negf %72 : vector<2x128xf32>
    %74 = math.exp %73 : vector<2x128xf32>
    %cst_25 = arith.constant 1.000000e+00 : f32
    %75 = vector.broadcast %cst_25 : f32 to vector<2x128xf32>
    %76 = arith.addf %75, %74 : vector<2x128xf32>
    %77 = arith.divf %75, %76 : vector<2x128xf32>
    %78 = vector.extract_strided_slice %71 {offsets = [0, 128], sizes = [2, 128], strides = [1, 1]} : vector<2x512xf32> to vector<2x128xf32>
    %79 = arith.negf %78 : vector<2x128xf32>
    %80 = math.exp %79 : vector<2x128xf32>
    %cst_26 = arith.constant 1.000000e+00 : f32
    %81 = vector.broadcast %cst_26 : f32 to vector<2x128xf32>
    %82 = arith.addf %81, %80 : vector<2x128xf32>
    %83 = arith.divf %81, %82 : vector<2x128xf32>
    %84 = vector.extract_strided_slice %71 {offsets = [0, 256], sizes = [2, 128], strides = [1, 1]} : vector<2x512xf32> to vector<2x128xf32>
    %85 = math.tanh %84 : vector<2x128xf32>
    %86 = vector.extract_strided_slice %71 {offsets = [0, 384], sizes = [2, 128], strides = [1, 1]} : vector<2x512xf32> to vector<2x128xf32>
    %87 = arith.negf %86 : vector<2x128xf32>
    %88 = math.exp %87 : vector<2x128xf32>
    %cst_27 = arith.constant 1.000000e+00 : f32
    %89 = vector.broadcast %cst_27 : f32 to vector<2x128xf32>
    %90 = arith.addf %89, %88 : vector<2x128xf32>
    %91 = arith.divf %89, %90 : vector<2x128xf32>
    %92 = arith.mulf %83, %64 : vector<2x128xf32>
    %93 = arith.mulf %77, %85 : vector<2x128xf32>
    %94 = arith.addf %92, %93 : vector<2x128xf32>
    %95 = math.tanh %94 : vector<2x128xf32>
    %96 = arith.mulf %91, %95 : vector<2x128xf32>
    %c4 = arith.constant 4 : index
    %c0_28 = arith.constant 0 : index
    %97 = vector.load %arg8[%c4, %c0_28] : memref<16x128xf32, #tpu.memory_space<vmem>>, vector<2x128xf32>
    tpu.vector_store %arg8[%c4, %c0_28], %96 {strides = array<i32>} : memref<16x128xf32, #tpu.memory_space<vmem>>, vector<2x128xf32>,
    %98 = vector.extract_strided_slice %5 {offsets = [6, 0], sizes = [2, 512], strides = [1, 1]} : vector<16x512xf32> to vector<2x512xf32>
    %c0_29 = arith.constant 0 : index
    %c0_30 = arith.constant 0 : index
    %99 = vector.load %arg3[%c0_29, %c0_30] : memref<128x512xf32, #tpu.memory_space<vmem>>, vector<128x512xf32>
    %cst_31 = arith.constant dense<0.000000e+00> : vector<2x512xf32>
    %100 = tpu.matmul %96, %99, %cst_31 {dimension_numbers = #tpu.dot_dimension_numbers<[1], [0], [0], [1], [0, 0, 1, 1], [], []>} : vector<2x128xf32>, vector<128x512xf32>, vector<2x512xf32> -> vector<2x512xf32>
    %101 = arith.addf %98, %100 : vector<2x512xf32>
    %102 = vector.extract_strided_slice %101 {offsets = [0, 0], sizes = [2, 128], strides = [1, 1]} : vector<2x512xf32> to vector<2x128xf32>
    %103 = arith.negf %102 : vector<2x128xf32>
    %104 = math.exp %103 : vector<2x128xf32>
    %cst_32 = arith.constant 1.000000e+00 : f32
    %105 = vector.broadcast %cst_32 : f32 to vector<2x128xf32>
    %106 = arith.addf %105, %104 : vector<2x128xf32>
    %107 = arith.divf %105, %106 : vector<2x128xf32>
    %108 = vector.extract_strided_slice %101 {offsets = [0, 128], sizes = [2, 128], strides = [1, 1]} : vector<2x512xf32> to vector<2x128xf32>
    %109 = arith.negf %108 : vector<2x128xf32>
    %110 = math.exp %109 : vector<2x128xf32>
    %cst_33 = arith.constant 1.000000e+00 : f32
    %111 = vector.broadcast %cst_33 : f32 to vector<2x128xf32>
    %112 = arith.addf %111, %110 : vector<2x128xf32>
    %113 = arith.divf %111, %112 : vector<2x128xf32>
    %114 = vector.extract_strided_slice %101 {offsets = [0, 256], sizes = [2, 128], strides = [1, 1]} : vector<2x512xf32> to vector<2x128xf32>
    %115 = math.tanh %114 : vector<2x128xf32>
    %116 = vector.extract_strided_slice %101 {offsets = [0, 384], sizes = [2, 128], strides = [1, 1]} : vector<2x512xf32> to vector<2x128xf32>
    %117 = arith.negf %116 : vector<2x128xf32>
    %118 = math.exp %117 : vector<2x128xf32>
    %cst_34 = arith.constant 1.000000e+00 : f32
    %119 = vector.broadcast %cst_34 : f32 to vector<2x128xf32>
    %120 = arith.addf %119, %118 : vector<2x128xf32>
    %121 = arith.divf %119, %120 : vector<2x128xf32>
    %122 = arith.mulf %113, %94 : vector<2x128xf32>
    %123 = arith.mulf %107, %115 : vector<2x128xf32>
    %124 = arith.addf %122, %123 : vector<2x128xf32>
    %125 = math.tanh %124 : vector<2x128xf32>
    %126 = arith.mulf %121, %125 : vector<2x128xf32>
    %c6 = arith.constant 6 : index
    %c0_35 = arith.constant 0 : index
    %127 = vector.load %arg8[%c6, %c0_35] : memref<16x128xf32, #tpu.memory_space<vmem>>, vector<2x128xf32>
    tpu.vector_store %arg8[%c6, %c0_35], %126 {strides = array<i32>} : memref<16x128xf32, #tpu.memory_space<vmem>>, vector<2x128xf32>,
    %128 = vector.extract_strided_slice %5 {offsets = [8, 0], sizes = [2, 512], strides = [1, 1]} : vector<16x512xf32> to vector<2x512xf32>
    %c0_36 = arith.constant 0 : index
    %c0_37 = arith.constant 0 : index
    %129 = vector.load %arg3[%c0_36, %c0_37] : memref<128x512xf32, #tpu.memory_space<vmem>>, vector<128x512xf32>
    %cst_38 = arith.constant dense<0.000000e+00> : vector<2x512xf32>
    %130 = tpu.matmul %126, %129, %cst_38 {dimension_numbers = #tpu.dot_dimension_numbers<[1], [0], [0], [1], [0, 0, 1, 1], [], []>} : vector<2x128xf32>, vector<128x512xf32>, vector<2x512xf32> -> vector<2x512xf32>
    %131 = arith.addf %128, %130 : vector<2x512xf32>
    %132 = vector.extract_strided_slice %131 {offsets = [0, 0], sizes = [2, 128], strides = [1, 1]} : vector<2x512xf32> to vector<2x128xf32>
    %133 = arith.negf %132 : vector<2x128xf32>
    %134 = math.exp %133 : vector<2x128xf32>
    %cst_39 = arith.constant 1.000000e+00 : f32
    %135 = vector.broadcast %cst_39 : f32 to vector<2x128xf32>
    %136 = arith.addf %135, %134 : vector<2x128xf32>
    %137 = arith.divf %135, %136 : vector<2x128xf32>
    %138 = vector.extract_strided_slice %131 {offsets = [0, 128], sizes = [2, 128], strides = [1, 1]} : vector<2x512xf32> to vector<2x128xf32>
    %139 = arith.negf %138 : vector<2x128xf32>
    %140 = math.exp %139 : vector<2x128xf32>
    %cst_40 = arith.constant 1.000000e+00 : f32
    %141 = vector.broadcast %cst_40 : f32 to vector<2x128xf32>
    %142 = arith.addf %141, %140 : vector<2x128xf32>
    %143 = arith.divf %141, %142 : vector<2x128xf32>
    %144 = vector.extract_strided_slice %131 {offsets = [0, 256], sizes = [2, 128], strides = [1, 1]} : vector<2x512xf32> to vector<2x128xf32>
    %145 = math.tanh %144 : vector<2x128xf32>
    %146 = vector.extract_strided_slice %131 {offsets = [0, 384], sizes = [2, 128], strides = [1, 1]} : vector<2x512xf32> to vector<2x128xf32>
    %147 = arith.negf %146 : vector<2x128xf32>
    %148 = math.exp %147 : vector<2x128xf32>
    %cst_41 = arith.constant 1.000000e+00 : f32
    %149 = vector.broadcast %cst_41 : f32 to vector<2x128xf32>
    %150 = arith.addf %149, %148 : vector<2x128xf32>
    %151 = arith.divf %149, %150 : vector<2x128xf32>
    %152 = arith.mulf %143, %124 : vector<2x128xf32>
    %153 = arith.mulf %137, %145 : vector<2x128xf32>
    %154 = arith.addf %152, %153 : vector<2x128xf32>
    %155 = math.tanh %154 : vector<2x128xf32>
    %156 = arith.mulf %151, %155 : vector<2x128xf32>
    %c8 = arith.constant 8 : index
    %c0_42 = arith.constant 0 : index
    %157 = vector.load %arg8[%c8, %c0_42] : memref<16x128xf32, #tpu.memory_space<vmem>>, vector<2x128xf32>
    tpu.vector_store %arg8[%c8, %c0_42], %156 {strides = array<i32>} : memref<16x128xf32, #tpu.memory_space<vmem>>, vector<2x128xf32>,
    %158 = vector.extract_strided_slice %5 {offsets = [10, 0], sizes = [2, 512], strides = [1, 1]} : vector<16x512xf32> to vector<2x512xf32>
    %c0_43 = arith.constant 0 : index
    %c0_44 = arith.constant 0 : index
    %159 = vector.load %arg3[%c0_43, %c0_44] : memref<128x512xf32, #tpu.memory_space<vmem>>, vector<128x512xf32>
    %cst_45 = arith.constant dense<0.000000e+00> : vector<2x512xf32>
    %160 = tpu.matmul %156, %159, %cst_45 {dimension_numbers = #tpu.dot_dimension_numbers<[1], [0], [0], [1], [0, 0, 1, 1], [], []>} : vector<2x128xf32>, vector<128x512xf32>, vector<2x512xf32> -> vector<2x512xf32>
    %161 = arith.addf %158, %160 : vector<2x512xf32>
    %162 = vector.extract_strided_slice %161 {offsets = [0, 0], sizes = [2, 128], strides = [1, 1]} : vector<2x512xf32> to vector<2x128xf32>
    %163 = arith.negf %162 : vector<2x128xf32>
    %164 = math.exp %163 : vector<2x128xf32>
    %cst_46 = arith.constant 1.000000e+00 : f32
    %165 = vector.broadcast %cst_46 : f32 to vector<2x128xf32>
    %166 = arith.addf %165, %164 : vector<2x128xf32>
    %167 = arith.divf %165, %166 : vector<2x128xf32>
    %168 = vector.extract_strided_slice %161 {offsets = [0, 128], sizes = [2, 128], strides = [1, 1]} : vector<2x512xf32> to vector<2x128xf32>
    %169 = arith.negf %168 : vector<2x128xf32>
    %170 = math.exp %169 : vector<2x128xf32>
    %cst_47 = arith.constant 1.000000e+00 : f32
    %171 = vector.broadcast %cst_47 : f32 to vector<2x128xf32>
    %172 = arith.addf %171, %170 : vector<2x128xf32>
    %173 = arith.divf %171, %172 : vector<2x128xf32>
    %174 = vector.extract_strided_slice %161 {offsets = [0, 256], sizes = [2, 128], strides = [1, 1]} : vector<2x512xf32> to vector<2x128xf32>
    %175 = math.tanh %174 : vector<2x128xf32>
    %176 = vector.extract_strided_slice %161 {offsets = [0, 384], sizes = [2, 128], strides = [1, 1]} : vector<2x512xf32> to vector<2x128xf32>
    %177 = arith.negf %176 : vector<2x128xf32>
    %178 = math.exp %177 : vector<2x128xf32>
    %cst_48 = arith.constant 1.000000e+00 : f32
    %179 = vector.broadcast %cst_48 : f32 to vector<2x128xf32>
    %180 = arith.addf %179, %178 : vector<2x128xf32>
    %181 = arith.divf %179, %180 : vector<2x128xf32>
    %182 = arith.mulf %173, %154 : vector<2x128xf32>
    %183 = arith.mulf %167, %175 : vector<2x128xf32>
    %184 = arith.addf %182, %183 : vector<2x128xf32>
    %185 = math.tanh %184 : vector<2x128xf32>
    %186 = arith.mulf %181, %185 : vector<2x128xf32>
    %c10 = arith.constant 10 : index
    %c0_49 = arith.constant 0 : index
    %187 = vector.load %arg8[%c10, %c0_49] : memref<16x128xf32, #tpu.memory_space<vmem>>, vector<2x128xf32>
    tpu.vector_store %arg8[%c10, %c0_49], %186 {strides = array<i32>} : memref<16x128xf32, #tpu.memory_space<vmem>>, vector<2x128xf32>,
    %188 = vector.extract_strided_slice %5 {offsets = [12, 0], sizes = [2, 512], strides = [1, 1]} : vector<16x512xf32> to vector<2x512xf32>
    %c0_50 = arith.constant 0 : index
    %c0_51 = arith.constant 0 : index
    %189 = vector.load %arg3[%c0_50, %c0_51] : memref<128x512xf32, #tpu.memory_space<vmem>>, vector<128x512xf32>
    %cst_52 = arith.constant dense<0.000000e+00> : vector<2x512xf32>
    %190 = tpu.matmul %186, %189, %cst_52 {dimension_numbers = #tpu.dot_dimension_numbers<[1], [0], [0], [1], [0, 0, 1, 1], [], []>} : vector<2x128xf32>, vector<128x512xf32>, vector<2x512xf32> -> vector<2x512xf32>
    %191 = arith.addf %188, %190 : vector<2x512xf32>
    %192 = vector.extract_strided_slice %191 {offsets = [0, 0], sizes = [2, 128], strides = [1, 1]} : vector<2x512xf32> to vector<2x128xf32>
    %193 = arith.negf %192 : vector<2x128xf32>
    %194 = math.exp %193 : vector<2x128xf32>
    %cst_53 = arith.constant 1.000000e+00 : f32
    %195 = vector.broadcast %cst_53 : f32 to vector<2x128xf32>
    %196 = arith.addf %195, %194 : vector<2x128xf32>
    %197 = arith.divf %195, %196 : vector<2x128xf32>
    %198 = vector.extract_strided_slice %191 {offsets = [0, 128], sizes = [2, 128], strides = [1, 1]} : vector<2x512xf32> to vector<2x128xf32>
    %199 = arith.negf %198 : vector<2x128xf32>
    %200 = math.exp %199 : vector<2x128xf32>
    %cst_54 = arith.constant 1.000000e+00 : f32
    %201 = vector.broadcast %cst_54 : f32 to vector<2x128xf32>
    %202 = arith.addf %201, %200 : vector<2x128xf32>
    %203 = arith.divf %201, %202 : vector<2x128xf32>
    %204 = vector.extract_strided_slice %191 {offsets = [0, 256], sizes = [2, 128], strides = [1, 1]} : vector<2x512xf32> to vector<2x128xf32>
    %205 = math.tanh %204 : vector<2x128xf32>
    %206 = vector.extract_strided_slice %191 {offsets = [0, 384], sizes = [2, 128], strides = [1, 1]} : vector<2x512xf32> to vector<2x128xf32>
    %207 = arith.negf %206 : vector<2x128xf32>
    %208 = math.exp %207 : vector<2x128xf32>
    %cst_55 = arith.constant 1.000000e+00 : f32
    %209 = vector.broadcast %cst_55 : f32 to vector<2x128xf32>
    %210 = arith.addf %209, %208 : vector<2x128xf32>
    %211 = arith.divf %209, %210 : vector<2x128xf32>
    %212 = arith.mulf %203, %184 : vector<2x128xf32>
    %213 = arith.mulf %197, %205 : vector<2x128xf32>
    %214 = arith.addf %212, %213 : vector<2x128xf32>
    %215 = math.tanh %214 : vector<2x128xf32>
    %216 = arith.mulf %211, %215 : vector<2x128xf32>
    %c12 = arith.constant 12 : index
    %c0_56 = arith.constant 0 : index
    %217 = vector.load %arg8[%c12, %c0_56] : memref<16x128xf32, #tpu.memory_space<vmem>>, vector<2x128xf32>
    tpu.vector_store %arg8[%c12, %c0_56], %216 {strides = array<i32>} : memref<16x128xf32, #tpu.memory_space<vmem>>, vector<2x128xf32>,
    %218 = vector.extract_strided_slice %5 {offsets = [14, 0], sizes = [2, 512], strides = [1, 1]} : vector<16x512xf32> to vector<2x512xf32>
    %c0_57 = arith.constant 0 : index
    %c0_58 = arith.constant 0 : index
    %219 = vector.load %arg3[%c0_57, %c0_58] : memref<128x512xf32, #tpu.memory_space<vmem>>, vector<128x512xf32>
    %cst_59 = arith.constant dense<0.000000e+00> : vector<2x512xf32>
    %220 = tpu.matmul %216, %219, %cst_59 {dimension_numbers = #tpu.dot_dimension_numbers<[1], [0], [0], [1], [0, 0, 1, 1], [], []>} : vector<2x128xf32>, vector<128x512xf32>, vector<2x512xf32> -> vector<2x512xf32>
    %221 = arith.addf %218, %220 : vector<2x512xf32>
    %222 = vector.extract_strided_slice %221 {offsets = [0, 0], sizes = [2, 128], strides = [1, 1]} : vector<2x512xf32> to vector<2x128xf32>
    %223 = arith.negf %222 : vector<2x128xf32>
    %224 = math.exp %223 : vector<2x128xf32>
    %cst_60 = arith.constant 1.000000e+00 : f32
    %225 = vector.broadcast %cst_60 : f32 to vector<2x128xf32>
    %226 = arith.addf %225, %224 : vector<2x128xf32>
    %227 = arith.divf %225, %226 : vector<2x128xf32>
    %228 = vector.extract_strided_slice %221 {offsets = [0, 128], sizes = [2, 128], strides = [1, 1]} : vector<2x512xf32> to vector<2x128xf32>
    %229 = arith.negf %228 : vector<2x128xf32>
    %230 = math.exp %229 : vector<2x128xf32>
    %cst_61 = arith.constant 1.000000e+00 : f32
    %231 = vector.broadcast %cst_61 : f32 to vector<2x128xf32>
    %232 = arith.addf %231, %230 : vector<2x128xf32>
    %233 = arith.divf %231, %232 : vector<2x128xf32>
    %234 = vector.extract_strided_slice %221 {offsets = [0, 256], sizes = [2, 128], strides = [1, 1]} : vector<2x512xf32> to vector<2x128xf32>
    %235 = math.tanh %234 : vector<2x128xf32>
    %236 = vector.extract_strided_slice %221 {offsets = [0, 384], sizes = [2, 128], strides = [1, 1]} : vector<2x512xf32> to vector<2x128xf32>
    %237 = arith.negf %236 : vector<2x128xf32>
    %238 = math.exp %237 : vector<2x128xf32>
    %cst_62 = arith.constant 1.000000e+00 : f32
    %239 = vector.broadcast %cst_62 : f32 to vector<2x128xf32>
    %240 = arith.addf %239, %238 : vector<2x128xf32>
    %241 = arith.divf %239, %240 : vector<2x128xf32>
    %242 = arith.mulf %233, %214 : vector<2x128xf32>
    %243 = arith.mulf %227, %235 : vector<2x128xf32>
    %244 = arith.addf %242, %243 : vector<2x128xf32>
    %245 = math.tanh %244 : vector<2x128xf32>
    %246 = arith.mulf %241, %245 : vector<2x128xf32>
    %c14 = arith.constant 14 : index
    %c0_63 = arith.constant 0 : index
    %247 = vector.load %arg8[%c14, %c0_63] : memref<16x128xf32, #tpu.memory_space<vmem>>, vector<2x128xf32>
    tpu.vector_store %arg8[%c14, %c0_63], %246 {strides = array<i32>} : memref<16x128xf32, #tpu.memory_space<vmem>>, vector<2x128xf32>,
    %c0_64 = arith.constant 0 : index
    %c0_65 = arith.constant 0 : index
    %248 = vector.load %arg8[%c0_64, %c0_65] : memref<16x128xf32, #tpu.memory_space<vmem>>, vector<16x128xf32>
    %c0_66 = arith.constant 0 : index
    %c0_67 = arith.constant 0 : index
    %249 = vector.load %arg5[%c0_66, %c0_67] : memref<128x8xf32, #tpu.memory_space<vmem>>, vector<128x8xf32>
    %cst_68 = arith.constant dense<0.000000e+00> : vector<16x8xf32>
    %250 = tpu.matmul %248, %249, %cst_68 {dimension_numbers = #tpu.dot_dimension_numbers<[1], [0], [0], [1], [0, 0, 1, 1], [], []>} : vector<16x128xf32>, vector<128x8xf32>, vector<16x8xf32> -> vector<16x8xf32>
    %c0_69 = arith.constant 0 : index
    %c0_70 = arith.constant 0 : index
    %251 = vector.load %arg6[%c0_69, %c0_70] : memref<1x8xf32, #tpu.memory_space<vmem>>, vector<1x8xf32>
    %252 = vector.broadcast %251 : vector<1x8xf32> to vector<16x8xf32>
    %253 = arith.addf %250, %252 : vector<16x8xf32>
    %c0_71 = arith.constant 0 : index
    %c0_72 = arith.constant 0 : index
    %254 = vector.load %arg7[%c0_71, %c0_72] : memref<16x8xf32, #tpu.memory_space<vmem>>, vector<16x8xf32>
    tpu.vector_store %arg7[%c0_71, %c0_72], %253 {strides = array<i32>} : memref<16x8xf32, #tpu.memory_space<vmem>>, vector<16x8xf32>,
    return
  }
  func.func @transform_0(%arg0: i32) -> (i32, i32) {
    %c0_i32 = arith.constant 0 : i32
    %c0_i32_0 = arith.constant 0 : i32
    %c0_i32_1 = arith.constant 0 : i32
    return %c0_i32, %c0_i32_0 : i32, i32
  }
  func.func @transform_1(%arg0: i32) -> (i32, i32) {
    %c0_i32 = arith.constant 0 : i32
    %c0_i32_0 = arith.constant 0 : i32
    %c0_i32_1 = arith.constant 0 : i32
    return %c0_i32, %c0_i32_0 : i32, i32
  }
  func.func @transform_2(%arg0: i32) -> (i32, i32) {
    %c0_i32 = arith.constant 0 : i32
    %c0_i32_0 = arith.constant 0 : i32
    %c0_i32_1 = arith.constant 0 : i32
    return %c0_i32, %c0_i32_0 : i32, i32
  }
  func.func @transform_3(%arg0: i32) -> (i32, i32) {
    %c0_i32 = arith.constant 0 : i32
    %c0_i32_0 = arith.constant 0 : i32
    %c0_i32_1 = arith.constant 0 : i32
    return %c0_i32, %c0_i32_0 : i32, i32
  }
  func.func @transform_4(%arg0: i32) -> (i32, i32) {
    %c0_i32 = arith.constant 0 : i32
    %c0_i32_0 = arith.constant 0 : i32
    %c0_i32_1 = arith.constant 0 : i32
    return %c0_i32, %c0_i32_0 : i32, i32
  }
  func.func @transform_5(%arg0: i32) -> (i32, i32) {
    %c0_i32 = arith.constant 0 : i32
    %c0_i32_0 = arith.constant 0 : i32
    %c0_i32_1 = arith.constant 0 : i32
    return %c0_i32, %c0_i32_0 : i32, i32
  }
  func.func @transform_6(%arg0: i32) -> (i32, i32) {
    %c0_i32 = arith.constant 0 : i32
    %c0_i32_0 = arith.constant 0 : i32
    %c0_i32_1 = arith.constant 0 : i32
    return %c0_i32, %c0_i32_0 : i32, i32
  }
}

</mosaic_0001>

<llo_original>
// kernel: tpu_custom_call.1
$region0: #{tpu_custom_call.1}
  #allocation0 [shape = 'u32[]', space=smem, size = 0x4, offset = 0x4, fixed_abs, tag = 'smem constant byte address 0x4 - core index']
  #allocation1 [shape = 'u32[144,128]{1,0:T(1,128)}', space=vmem, size = 0x12000, scoped, tag = 'internal scratch']
  #allocation2 [shape = 'f32[16,128]{1,0:T(8,128)}', space=vmem, size = 0x2000, scoped, tag = 'scratch operand']
  %s0 = inlined_call_operand.vmem [shape: f32[16,64], index: 0, kind: input, shape index: {}]
  %s1 = inlined_call_operand.hbm [shape: f32[64,512], index: 1, kind: input, shape index: {}]
  %s2 = inlined_call_operand.hbm [shape: f32[128,512], index: 2, kind: input, shape index: {}]
  %s3 = inlined_call_operand.vmem [shape: f32[1,512], index: 3, kind: input, shape index: {}]
  %s4 = inlined_call_operand.vmem [shape: f32[128,8], index: 4, kind: input, shape index: {}]
  %s5 = inlined_call_operand.vmem [shape: f32[1,8], index: 5, kind: input, shape index: {}]
  %s6 = inlined_call_operand.vmem [shape: f32[16,8], index: 6, kind: output, shape index: {}]
  %s7 = sld [smem:[#allocation0]]
  $region42: #{tpu_custom_call.1} parent=0
    _
  %s9 = ssub.s32 1, %s7
  %s10 = scalar_select 0, %s9, %s7
  $region1: #{tpu_custom_call.1} parent=0
    #allocation3 [shape = 'u8[131072]{0}', space=vmem, size = 0x20000, scoped, tag = 'input window, operand 1, single buffered']
    #allocation4 [shape = 's32[1]{0}', space=sflag, size = 0x4, scoped, tag = 'scoped memory for tpu_custom_call.1']
    #allocation5 [shape = 'u8[262144]{0}', space=vmem, size = 0x40000, scoped, tag = 'input window, operand 2, single buffered']
    #allocation6 [shape = 's32[1]{0}', space=sflag, size = 0x4, scoped, tag = 'scoped memory for tpu_custom_call.1']
    %11 = vsyncpa [#allocation4], 0
    %12 = vsyncpa [#allocation6], 0
    // Predicated region
    $region2: #{tpu_custom_call.1} parent=1 // pred_check
      _
    $region3: #{tpu_custom_call.1} parent=1 // pred_check_branch
      %14 = sbr.rel (0) target = $region5
    $region4: #{tpu_custom_call.1} parent=1 // pred_region
      _
    $region5: #{tpu_custom_call.1} parent=1 // pred_fallthru
      _
    // Predicated region
    $region6: #{tpu_custom_call.1} parent=1 // pred_check
      _
    $region7: #{tpu_custom_call.1} parent=1 // pred_check_branch
      %16 = sbr.rel (0) target = $region9
    $region8: #{tpu_custom_call.1} parent=1 // pred_region
      %s18 = ssub.s32 4096, 4096
      %19 = vsyncadd [#allocation4], %s18
      %s20 = sshll.u32 [#allocation3], 4
      %s21 = int_to_ptr.vmem [resolvable:$true] %s20
      %26 = dma.hbm_to_vmem [thread:$0]  %s1, 4096, %s21, [#allocation4], 512, 512, 32
    $region9: #{tpu_custom_call.1} parent=1 // pred_fallthru
      _
    // Predicated region
    $region10: #{tpu_custom_call.1} parent=1 // pred_check
      _
    $region11: #{tpu_custom_call.1} parent=1 // pred_check_branch
      %28 = sbr.rel (0) target = $region13
    $region12: #{tpu_custom_call.1} parent=1 // pred_region
      %s30 = ssub.s32 8192, 8192
      %31 = vsyncadd [#allocation6], %s30
      %s32 = sshll.u32 [#allocation5], 4
      %s33 = int_to_ptr.vmem [resolvable:$true] %s32
      %38 = dma.hbm_to_vmem [thread:$0]  %s2, 8192, %s33, [#allocation6], 512, 512, 32
    $region13: #{tpu_custom_call.1} parent=1 // pred_fallthru
      _
    // Predicated region
    $region14: #{tpu_custom_call.1} parent=1 // pred_check
      _
    $region15: #{tpu_custom_call.1} parent=1 // pred_check_branch
      %40 = sbr.rel (0) target = $region17
    $region16: #{tpu_custom_call.1} parent=1 // pred_region
      _
    $region17: #{tpu_custom_call.1} parent=1 // pred_fallthru
      _
    // Predicated region
    $region18: #{tpu_custom_call.1} parent=1 // pred_check
      _
    $region19: #{tpu_custom_call.1} parent=1 // pred_check_branch
      %42 = sbr.rel (0) target = $region21
    $region20: #{tpu_custom_call.1} parent=1 // pred_region
      _
    $region21: #{tpu_custom_call.1} parent=1 // pred_fallthru
      _
    // Predicated region
    $region22: #{tpu_custom_call.1} parent=1 // pred_check
      _
    $region23: #{tpu_custom_call.1} parent=1 // pred_check_branch
      %44 = sbr.rel (0) target = $region25
    $region24: #{tpu_custom_call.1} parent=1 // pred_region
      _
    $region25: #{tpu_custom_call.1} parent=1 // pred_fallthru
      _
    // Predicated region
    $region26: #{tpu_custom_call.1} parent=1 // pred_check
      _
    $region27: #{tpu_custom_call.1} parent=1 // pred_check_branch
      %46 = sbr.rel (0) target = $region29
    $region28: #{tpu_custom_call.1} parent=1 // pred_region
      %47 = dma.done [#allocation4], 4096
    $region29: #{tpu_custom_call.1} parent=1 // pred_fallthru
      _
    // Predicated region
    $region30: #{tpu_custom_call.1} parent=1 // pred_check
      _
    $region31: #{tpu_custom_call.1} parent=1 // pred_check_branch
      %49 = sbr.rel (0) target = $region33
    $region32: #{tpu_custom_call.1} parent=1 // pred_region
      %50 = dma.done [#allocation6], 8192
    $region33: #{tpu_custom_call.1} parent=1 // pred_fallthru
      _
    %v51 = vld [vmem:[%s0] sm:$0xff]
    %v52 = vld [vmem:[%s0 + $0x8] sm:$0xff]
    %v53 = vld [vmem:[#allocation3] sm:$0xff]
    %v54 = vld [vmem:[#allocation3 + $0x8] sm:$0xff]
    %v55 = vld [vmem:[#allocation3 + $0x10] sm:$0xff]
    %v56 = vld [vmem:[#allocation3 + $0x18] sm:$0xff]
    %v57 = vld [vmem:[#allocation3 + $0x20] sm:$0xff]
    %v58 = vld [vmem:[#allocation3 + $0x28] sm:$0xff]
    %v59 = vld [vmem:[#allocation3 + $0x30] sm:$0xff]
    %v60 = vld [vmem:[#allocation3 + $0x38] sm:$0xff]
    %v61 = vld [vmem:[#allocation3 + $0x40] sm:$0xff]
    %v62 = vld [vmem:[#allocation3 + $0x48] sm:$0xff]
    %v63 = vld [vmem:[#allocation3 + $0x50] sm:$0xff]
    %v64 = vld [vmem:[#allocation3 + $0x58] sm:$0xff]
    %v65 = vld [vmem:[#allocation3 + $0x60] sm:$0xff]
    %v66 = vld [vmem:[#allocation3 + $0x68] sm:$0xff]
    %v67 = vld [vmem:[#allocation3 + $0x70] sm:$0xff]
    %v68 = vld [vmem:[#allocation3 + $0x78] sm:$0xff]
    %v69 = vld [vmem:[#allocation3 + $0x80] sm:$0xff]
    %v70 = vld [vmem:[#allocation3 + $0x88] sm:$0xff]
    %v71 = vld [vmem:[#allocation3 + $0x90] sm:$0xff]
    %v72 = vld [vmem:[#allocation3 + $0x98] sm:$0xff]
    %v73 = vld [vmem:[#allocation3 + $0xa0] sm:$0xff]
    %v74 = vld [vmem:[#allocation3 + $0xa8] sm:$0xff]
    %v75 = vld [vmem:[#allocation3 + $0xb0] sm:$0xff]
    %v76 = vld [vmem:[#allocation3 + $0xb8] sm:$0xff]
    %v77 = vld [vmem:[#allocation3 + $0xc0] sm:$0xff]
    %v78 = vld [vmem:[#allocation3 + $0xc8] sm:$0xff]
    %v79 = vld [vmem:[#allocation3 + $0xd0] sm:$0xff]
    %v80 = vld [vmem:[#allocation3 + $0xd8] sm:$0xff]
    %v81 = vld [vmem:[#allocation3 + $0xe0] sm:$0xff]
    %v82 = vld [vmem:[#allocation3 + $0xe8] sm:$0xff]
    %v83 = vld [vmem:[#allocation3 + $0xf0] sm:$0xff]
    %v84 = vld [vmem:[#allocation3 + $0xf8] sm:$0xff]
    %v85 = vld [vmem:[%s3] sm:$0xf]
    %v87 = vlaneseq
    %v88 = vshrl.u32 %v87, 7
    %v89 = vsub.s32 0, %v88
    %v90 = vrot.slane %v85, %v89
    %v91 = vlaneseq
    %v92 = vshrl.u32 %v91, 7
    %v93 = vsub.s32 1, %v92
    %v94 = vrot.slane %v85, %v93
    %v95 = vlaneseq
    %v96 = vshrl.u32 %v95, 7
    %v97 = vsub.s32 2, %v96
    %v98 = vrot.slane %v85, %v97
    %v99 = vlaneseq
    %v100 = vshrl.u32 %v99, 7
    %v101 = vsub.s32 3, %v100
    %v102 = vrot.slane %v85, %v101
    %vm107 = vcmask 523264
    %v109 = vsel %vm107, %v51, 0
    %v112 = vsel %vm107, %v52, 0
    %114 = vmatprep.subr.mxu0 %v54
    %115 = vmatpush1.msra.mxu0 %v53
    %116 = vmatprep.subr.mxu0 %v58
    %117 = vmatpush1.msra.mxu0 %v57
    %118 = vmatprep.subr.mxu0 %v62
    %119 = vmatpush1.msra.mxu0 %v61
    %120 = vmatprep.subr.mxu0 %v66
    %121 = vmatpush1.msra.mxu0 %v65
    %122 = vmatprep.subr.mxu0 %v70
    %123 = vmatpush1.msra.mxu0 %v69
    %124 = vmatprep.subr.mxu0 %v74
    %125 = vmatpush1.msra.mxu0 %v73
    %126 = vmatprep.subr.mxu0 %v78
    %127 = vmatpush1.msra.mxu0 %v77
    %128 = vmatprep.subr.mxu0 %v82
    %129 = vmatpush1.msra.mxu0 %v81
    %130 = vmatprep.subr.mxu0 0.0
    %131 = vmatpush1.msra.mxu0 0.0
    %132 = vmatprep.subr.mxu0 0.0
    %133 = vmatpush1.msra.mxu0 0.0
    %134 = vmatprep.subr.mxu0 0.0
    %135 = vmatpush1.msra.mxu0 0.0
    %136 = vmatprep.subr.mxu0 0.0
    %137 = vmatpush1.msra.mxu0 0.0
    %138 = vmatprep.subr.mxu0 0.0
    %139 = vmatpush1.msra.mxu0 0.0
    %140 = vmatprep.subr.mxu0 0.0
    %141 = vmatpush1.msra.mxu0 0.0
    %142 = vmatprep.subr.mxu0 0.0
    %143 = vmatpush1.msra.mxu0 0.0
    %144 = vmatprep.subr.mxu0 0.0
    %145 = vmatpush1.msra.mxu0 0.0
    %146 = vmatprep.subr.mxu0 0.0
    %147 = vmatpush1.msra.mxu0 0.0
    %148 = vmatprep.subr.mxu0 0.0
    %149 = vmatpush1.msra.mxu0 0.0
    %150 = vmatprep.subr.mxu0 0.0
    %151 = vmatpush1.msra.mxu0 0.0
    %152 = vmatprep.subr.mxu0 0.0
    %153 = vmatpush1.msra.mxu0 0.0
    %154 = vmatprep.subr.mxu0 0.0
    %155 = vmatpush1.msra.mxu0 0.0
    %156 = vmatprep.subr.mxu0 0.0
    %157 = vmatpush1.msra.mxu0 0.0
    %158 = vmatprep.subr.mxu0 0.0
    %159 = vmatpush1.msra.mxu0 0.0
    %160 = vmatprep.subr.mxu0 0.0
    %161 = vmatpush1.msra.mxu0 0.0
    %162 = vmatprep.subr.mxu0 0.0
    %163 = vmatpush1.msra.mxu0 0.0
    %164 = vmatprep.subr.mxu0 0.0
    %165 = vmatpush1.msra.mxu0 0.0
    %166 = vmatprep.subr.mxu0 0.0
    %167 = vmatpush1.msra.mxu0 0.0
    %168 = vmatprep.subr.mxu0 0.0
    %169 = vmatpush1.msra.mxu0 0.0
    %170 = vmatprep.subr.mxu0 0.0
    %171 = vmatpush1.msra.mxu0 0.0
    %172 = vmatprep.subr.mxu0 0.0
    %173 = vmatpush1.msra.mxu0 0.0
    %174 = vmatprep.subr.mxu0 0.0
    %175 = vmatpush1.msra.mxu0 0.0
    %176 = vmatprep.subr.mxu0 0.0
    %177 = vmatpush1.msra.mxu0 0.0
    %178 = vmatprep.mubr.f32.mxu0 0.0
    %179 = vmatmul.mubr.f32.gmra.mrb[0].mxu0 %v109
    %v180 = vpop.f32.mrb[0].mxu0
    %v181 = vadd.f32 %v90, %v180
    %v182 = vpop.f32.mrb[0].mxu0
    %v183 = vadd.f32 %v94, %v182
    %184 = vmatprep.mubr.f32.mxu0 0.0
    %185 = vmatmul.mubr.f32.gmra.mrb[0].mxu0 %v112
    %v186 = vpop.f32.mrb[0].mxu0
    %v187 = vadd.f32 %v90, %v186
    %v188 = vpop.f32.mrb[0].mxu0
    %v189 = vadd.f32 %v94, %v188
    %190 = vdwg.mxu0
    %191 = vmatprep.subr.mxu0 %v56
    %192 = vmatpush1.msra.mxu0 %v55
    %193 = vmatprep.subr.mxu0 %v60
    %194 = vmatpush1.msra.mxu0 %v59
    %195 = vmatprep.subr.mxu0 %v64
    %196 = vmatpush1.msra.mxu0 %v63
    %197 = vmatprep.subr.mxu0 %v68
    %198 = vmatpush1.msra.mxu0 %v67
    %199 = vmatprep.subr.mxu0 %v72
    %200 = vmatpush1.msra.mxu0 %v71
    %201 = vmatprep.subr.mxu0 %v76
    %202 = vmatpush1.msra.mxu0 %v75
    %203 = vmatprep.subr.mxu0 %v80
    %204 = vmatpush1.msra.mxu0 %v79
    %205 = vmatprep.subr.mxu0 %v84
    %206 = vmatpush1.msra.mxu0 %v83
    %207 = vmatprep.subr.mxu0 0.0
    %208 = vmatpush1.msra.mxu0 0.0
    %209 = vmatprep.subr.mxu0 0.0
    %210 = vmatpush1.msra.mxu0 0.0
    %211 = vmatprep.subr.mxu0 0.0
    %212 = vmatpush1.msra.mxu0 0.0
    %213 = vmatprep.subr.mxu0 0.0
    %214 = vmatpush1.msra.mxu0 0.0
    %215 = vmatprep.subr.mxu0 0.0
    %216 = vmatpush1.msra.mxu0 0.0
    %217 = vmatprep.subr.mxu0 0.0
    %218 = vmatpush1.msra.mxu0 0.0
    %219 = vmatprep.subr.mxu0 0.0
    %220 = vmatpush1.msra.mxu0 0.0
    %221 = vmatprep.subr.mxu0 0.0
    %222 = vmatpush1.msra.mxu0 0.0
    %223 = vmatprep.subr.mxu0 0.0
    %224 = vmatpush1.msra.mxu0 0.0
    %225 = vmatprep.subr.mxu0 0.0
    %226 = vmatpush1.msra.mxu0 0.0
    %227 = vmatprep.subr.mxu0 0.0
    %228 = vmatpush1.msra.mxu0 0.0
    %229 = vmatprep.subr.mxu0 0.0
    %230 = vmatpush1.msra.mxu0 0.0
    %231 = vmatprep.subr.mxu0 0.0
    %232 = vmatpush1.msra.mxu0 0.0
    %233 = vmatprep.subr.mxu0 0.0
    %234 = vmatpush1.msra.mxu0 0.0
    %235 = vmatprep.subr.mxu0 0.0
    %236 = vmatpush1.msra.mxu0 0.0
    %237 = vmatprep.subr.mxu0 0.0
    %238 = vmatpush1.msra.mxu0 0.0
    %239 = vmatprep.subr.mxu0 0.0
    %240 = vmatpush1.msra.mxu0 0.0
    %241 = vmatprep.subr.mxu0 0.0
    %242 = vmatpush1.msra.mxu0 0.0
    %243 = vmatprep.subr.mxu0 0.0
    %244 = vmatpush1.msra.mxu0 0.0
    %245 = vmatprep.subr.mxu0 0.0
    %246 = vmatpush1.msra.mxu0 0.0
    %247 = vmatprep.subr.mxu0 0.0
    %248 = vmatpush1.msra.mxu0 0.0
    %249 = vmatprep.subr.mxu0 0.0
    %250 = vmatpush1.msra.mxu0 0.0
    %251 = vmatprep.subr.mxu0 0.0
    %252 = vmatpush1.msra.mxu0 0.0
    %253 = vmatprep.subr.mxu0 0.0
    %254 = vmatpush1.msra.mxu0 0.0
    %255 = vmatprep.mubr.f32.mxu0 0.0
    %256 = vmatmul.mubr.f32.gmra.mrb[0].mxu0 %v109
    %v257 = vpop.f32.mrb[0].mxu0
    %v258 = vadd.f32 %v98, %v257
    %v259 = vpop.f32.mrb[0].mxu0
    %v260 = vadd.f32 %v102, %v259
    %261 = vmatprep.mubr.f32.mxu0 0.0
    %262 = vmatmul.mubr.f32.gmra.mrb[0].mxu0 %v112
    %v263 = vpop.f32.mrb[0].mxu0
    %v264 = vadd.f32 %v98, %v263
    %v265 = vpop.f32.mrb[0].mxu0
    %v266 = vadd.f32 %v102, %v265
    %267 = vdwg.mxu0
    %v268 = vld [vmem:[#allocation5] sm:$0xff]
    %v269 = vld [vmem:[#allocation5 + $0x8] sm:$0xff]
    %v270 = vld [vmem:[#allocation5 + $0x10] sm:$0xff]
    %v271 = vld [vmem:[#allocation5 + $0x18] sm:$0xff]
    %v272 = vld [vmem:[#allocation5 + $0x20] sm:$0xff]
    %v273 = vld [vmem:[#allocation5 + $0x28] sm:$0xff]
    %v274 = vld [vmem:[#allocation5 + $0x30] sm:$0xff]
    %v275 = vld [vmem:[#allocation5 + $0x38] sm:$0xff]
    %v276 = vld [vmem:[#allocation5 + $0x40] sm:$0xff]
    %v277 = vld [vmem:[#allocation5 + $0x48] sm:$0xff]
    %v278 = vld [vmem:[#allocation5 + $0x50] sm:$0xff]
    %v279 = vld [vmem:[#allocation5 + $0x58] sm:$0xff]
    %v280 = vld [vmem:[#allocation5 + $0x60] sm:$0xff]
    %v281 = vld [vmem:[#allocation5 + $0x68] sm:$0xff]
    %v282 = vld [vmem:[#allocation5 + $0x70] sm:$0xff]
    %v283 = vld [vmem:[#allocation5 + $0x78] sm:$0xff]
    %v284 = vld [vmem:[#allocation5 + $0x80] sm:$0xff]
    %v285 = vld [vmem:[#allocation5 + $0x88] sm:$0xff]
    %v286 = vld [vmem:[#allocation5 + $0x90] sm:$0xff]
    %v287 = vld [vmem:[#allocation5 + $0x98] sm:$0xff]
    %v288 = vld [vmem:[#allocation5 + $0xa0] sm:$0xff]
    %v289 = vld [vmem:[#allocation5 + $0xa8] sm:$0xff]
    %v290 = vld [vmem:[#allocation5 + $0xb0] sm:$0xff]
    %v291 = vld [vmem:[#allocation5 + $0xb8] sm:$0xff]
    %v292 = vld [vmem:[#allocation5 + $0xc0] sm:$0xff]
    %v293 = vld [vmem:[#allocation5 + $0xc8] sm:$0xff]
    %v294 = vld [vmem:[#allocation5 + $0xd0] sm:$0xff]
    %v295 = vld [vmem:[#allocation5 + $0xd8] sm:$0xff]
    %v296 = vld [vmem:[#allocation5 + $0xe0] sm:$0xff]
    %v297 = vld [vmem:[#allocation5 + $0xe8] sm:$0xff]
    %v298 = vld [vmem:[#allocation5 + $0xf0] sm:$0xff]
    %v299 = vld [vmem:[#allocation5 + $0xf8] sm:$0xff]
    %v300 = vld [vmem:[#allocation5 + $0x100] sm:$0xff]
    %v301 = vld [vmem:[#allocation5 + $0x108] sm:$0xff]
    %v302 = vld [vmem:[#allocation5 + $0x110] sm:$0xff]
    %v303 = vld [vmem:[#allocation5 + $0x118] sm:$0xff]
    %v304 = vld [vmem:[#allocation5 + $0x120] sm:$0xff]
    %v305 = vld [vmem:[#allocation5 + $0x128] sm:$0xff]
    %v306 = vld [vmem:[#allocation5 + $0x130] sm:$0xff]
    %v307 = vld [vmem:[#allocation5 + $0x138] sm:$0xff]
    %v308 = vld [vmem:[#allocation5 + $0x140] sm:$0xff]
    %v309 = vld [vmem:[#allocation5 + $0x148] sm:$0xff]
    %v310 = vld [vmem:[#allocation5 + $0x150] sm:$0xff]
    %v311 = vld [vmem:[#allocation5 + $0x158] sm:$0xff]
    %v312 = vld [vmem:[#allocation5 + $0x160] sm:$0xff]
    %v313 = vld [vmem:[#allocation5 + $0x168] sm:$0xff]
    %v314 = vld [vmem:[#allocation5 + $0x170] sm:$0xff]
    %v315 = vld [vmem:[#allocation5 + $0x178] sm:$0xff]
    %v316 = vld [vmem:[#allocation5 + $0x180] sm:$0xff]
    %v317 = vld [vmem:[#allocation5 + $0x188] sm:$0xff]
    %v318 = vld [vmem:[#allocation5 + $0x190] sm:$0xff]
    %v319 = vld [vmem:[#allocation5 + $0x198] sm:$0xff]
    %v320 = vld [vmem:[#allocation5 + $0x1a0] sm:$0xff]
    %v321 = vld [vmem:[#allocation5 + $0x1a8] sm:$0xff]
    %v322 = vld [vmem:[#allocation5 + $0x1b0] sm:$0xff]
    %v323 = vld [vmem:[#allocation5 + $0x1b8] sm:$0xff]
    %v324 = vld [vmem:[#allocation5 + $0x1c0] sm:$0xff]
    %v325 = vld [vmem:[#allocation5 + $0x1c8] sm:$0xff]
    %v326 = vld [vmem:[#allocation5 + $0x1d0] sm:$0xff]
    %v327 = vld [vmem:[#allocation5 + $0x1d8] sm:$0xff]
    %v328 = vld [vmem:[#allocation5 + $0x1e0] sm:$0xff]
    %v329 = vld [vmem:[#allocation5 + $0x1e8] sm:$0xff]
    %v330 = vld [vmem:[#allocation5 + $0x1f0] sm:$0xff]
    %v331 = vld [vmem:[#allocation5 + $0x1f8] sm:$0xff]
    %332 = vmatprep.subr.mxu0 %v269
    %333 = vmatpush1.msra.mxu0 %v268
    %334 = vmatprep.subr.mxu0 %v273
    %335 = vmatpush1.msra.mxu0 %v272
    %336 = vmatprep.subr.mxu0 %v277
    %337 = vmatpush1.msra.mxu0 %v276
    %338 = vmatprep.subr.mxu0 %v281
    %339 = vmatpush1.msra.mxu0 %v280
    %340 = vmatprep.subr.mxu0 %v285
    %341 = vmatpush1.msra.mxu0 %v284
    %342 = vmatprep.subr.mxu0 %v289
    %343 = vmatpush1.msra.mxu0 %v288
    %344 = vmatprep.subr.mxu0 %v293
    %345 = vmatpush1.msra.mxu0 %v292
    %346 = vmatprep.subr.mxu0 %v297
    %347 = vmatpush1.msra.mxu0 %v296
    %348 = vmatprep.subr.mxu0 %v301
    %349 = vmatpush1.msra.mxu0 %v300
    %350 = vmatprep.subr.mxu0 %v305
    %351 = vmatpush1.msra.mxu0 %v304
    %352 = vmatprep.subr.mxu0 %v309
    %353 = vmatpush1.msra.mxu0 %v308
    %354 = vmatprep.subr.mxu0 %v313
    %355 = vmatpush1.msra.mxu0 %v312
    %356 = vmatprep.subr.mxu0 %v317
    %357 = vmatpush1.msra.mxu0 %v316
    %358 = vmatprep.subr.mxu0 %v321
    %359 = vmatpush1.msra.mxu0 %v320
    %360 = vmatprep.subr.mxu0 %v325
    %361 = vmatpush1.msra.mxu0 %v324
    %362 = vmatprep.subr.mxu0 %v329
    %363 = vmatpush1.msra.mxu0 %v328
    %364 = vmatprep.subr.mxu0 0.0
    %365 = vmatpush1.msra.mxu0 0.0
    %366 = vmatprep.subr.mxu0 0.0
    %367 = vmatpush1.msra.mxu0 0.0
    %368 = vmatprep.subr.mxu0 0.0
    %369 = vmatpush1.msra.mxu0 0.0
    %370 = vmatprep.subr.mxu0 0.0
    %371 = vmatpush1.msra.mxu0 0.0
    %372 = vmatprep.subr.mxu0 0.0
    %373 = vmatpush1.msra.mxu0 0.0
    %374 = vmatprep.subr.mxu0 0.0
    %375 = vmatpush1.msra.mxu0 0.0
    %376 = vmatprep.subr.mxu0 0.0
    %377 = vmatpush1.msra.mxu0 0.0
    %378 = vmatprep.subr.mxu0 0.0
    %379 = vmatpush1.msra.mxu0 0.0
    %380 = vmatprep.subr.mxu0 0.0
    %381 = vmatpush1.msra.mxu0 0.0
    %382 = vmatprep.subr.mxu0 0.0
    %383 = vmatpush1.msra.mxu0 0.0
    %384 = vmatprep.subr.mxu0 0.0
    %385 = vmatpush1.msra.mxu0 0.0
    %386 = vmatprep.subr.mxu0 0.0
    %387 = vmatpush1.msra.mxu0 0.0
    %388 = vmatprep.subr.mxu0 0.0
    %389 = vmatpush1.msra.mxu0 0.0
    %390 = vmatprep.subr.mxu0 0.0
    %391 = vmatpush1.msra.mxu0 0.0
    %392 = vmatprep.subr.mxu0 0.0
    %393 = vmatpush1.msra.mxu0 0.0
    %394 = vmatprep.subr.mxu0 0.0
    %395 = vmatpush1.msra.mxu0 0.0
    %396 = vmatprep.mubr.f32.mxu0 0.0
    %397 = vmatmul.mubr.f32.gmra.mrb[0].mxu0 0.0
    %v398 = vpop.f32.mrb[0].mxu0
    %v399 = vadd.f32 0.0, %v398
    %v400 = vpop.f32.mrb[0].mxu0
    %v401 = vadd.f32 0.0, %v400
    %402 = vdwg.mxu0
    %403 = vmatprep.subr.mxu0 %v271
    %404 = vmatpush1.msra.mxu0 %v270
    %405 = vmatprep.subr.mxu0 %v275
    %406 = vmatpush1.msra.mxu0 %v274
    %407 = vmatprep.subr.mxu0 %v279
    %408 = vmatpush1.msra.mxu0 %v278
    %409 = vmatprep.subr.mxu0 %v283
    %410 = vmatpush1.msra.mxu0 %v282
    %411 = vmatprep.subr.mxu0 %v287
    %412 = vmatpush1.msra.mxu0 %v286
    %413 = vmatprep.subr.mxu0 %v291
    %414 = vmatpush1.msra.mxu0 %v290
    %415 = vmatprep.subr.mxu0 %v295
    %416 = vmatpush1.msra.mxu0 %v294
    %417 = vmatprep.subr.mxu0 %v299
    %418 = vmatpush1.msra.mxu0 %v298
    %419 = vmatprep.subr.mxu0 %v303
    %420 = vmatpush1.msra.mxu0 %v302
    %421 = vmatprep.subr.mxu0 %v307
    %422 = vmatpush1.msra.mxu0 %v306
    %423 = vmatprep.subr.mxu0 %v311
    %424 = vmatpush1.msra.mxu0 %v310
    %425 = vmatprep.subr.mxu0 %v315
    %426 = vmatpush1.msra.mxu0 %v314
    %427 = vmatprep.subr.mxu0 %v319
    %428 = vmatpush1.msra.mxu0 %v318
    %429 = vmatprep.subr.mxu0 %v323
    %430 = vmatpush1.msra.mxu0 %v322
    %431 = vmatprep.subr.mxu0 %v327
    %432 = vmatpush1.msra.mxu0 %v326
    %433 = vmatprep.subr.mxu0 %v331
    %434 = vmatpush1.msra.mxu0 %v330
    %435 = vmatprep.subr.mxu0 0.0
    %436 = vmatpush1.msra.mxu0 0.0
    %437 = vmatprep.subr.mxu0 0.0
    %438 = vmatpush1.msra.mxu0 0.0
    %439 = vmatprep.subr.mxu0 0.0
    %440 = vmatpush1.msra.mxu0 0.0
    %441 = vmatprep.subr.mxu0 0.0
    %442 = vmatpush1.msra.mxu0 0.0
    %443 = vmatprep.subr.mxu0 0.0
    %444 = vmatpush1.msra.mxu0 0.0
    %445 = vmatprep.subr.mxu0 0.0
    %446 = vmatpush1.msra.mxu0 0.0
    %447 = vmatprep.subr.mxu0 0.0
    %448 = vmatpush1.msra.mxu0 0.0
    %449 = vmatprep.subr.mxu0 0.0
    %450 = vmatpush1.msra.mxu0 0.0
    %451 = vmatprep.subr.mxu0 0.0
    %452 = vmatpush1.msra.mxu0 0.0
    %453 = vmatprep.subr.mxu0 0.0
    %454 = vmatpush1.msra.mxu0 0.0
    %455 = vmatprep.subr.mxu0 0.0
    %456 = vmatpush1.msra.mxu0 0.0
    %457 = vmatprep.subr.mxu0 0.0
    %458 = vmatpush1.msra.mxu0 0.0
    %459 = vmatprep.subr.mxu0 0.0
    %460 = vmatpush1.msra.mxu0 0.0
    %461 = vmatprep.subr.mxu0 0.0
    %462 = vmatpush1.msra.mxu0 0.0
    %463 = vmatprep.subr.mxu0 0.0
    %464 = vmatpush1.msra.mxu0 0.0
    %465 = vmatprep.subr.mxu0 0.0
    %466 = vmatpush1.msra.mxu0 0.0
    %467 = vmatprep.mubr.f32.mxu0 0.0
    %468 = vmatmul.mubr.f32.gmra.mrb[0].mxu0 0.0
    %v469 = vpop.f32.mrb[0].mxu0
    %v470 = vadd.f32 0.0, %v469
    %v471 = vpop.f32.mrb[0].mxu0
    %v472 = vadd.f32 0.0, %v471
    %473 = vdwg.mxu0
    %v474 = vadd.f32 %v181, %v399
    %v475 = vadd.f32 %v183, %v401
    %v476 = vadd.f32 %v258, %v470
    %v477 = vadd.f32 %v260, %v472
    %v478 = vxor.u32 %v474, 2147483648
    %v479 = vmul.f32 %v478, 1.442695
    %v480 = vpow.pop %v479
    %v481 = vadd.f32 %v480, 1.0
    %v482 = vrcp.pop %v481
    %v483 = vmul.f32 1.0, %v482
    %v484 = vxor.u32 %v475, 2147483648
    %v485 = vmul.f32 %v484, 1.442695
    %v486 = vpow.pop %v485
    %v487 = vadd.f32 %v486, 1.0
    %v488 = vrcp.pop %v487
    %v489 = vmul.f32 1.0, %v488
    %v490 = vtanh.pop %v476
    %v491 = vxor.u32 %v477, 2147483648
    %v492 = vmul.f32 %v491, 1.442695
    %v493 = vpow.pop %v492
    %v494 = vadd.f32 %v493, 1.0
    %v495 = vrcp.pop %v494
    %v496 = vmul.f32 1.0, %v495
    %v497 = vmul.f32 %v489, 0.0
    %v498 = vmul.f32 %v483, %v490
    %v499 = vadd.f32 %v497, %v498
    %v500 = vtanh.pop %v499
    %v501 = vmul.f32 %v496, %v500
    %502 = vst [vmem:[#allocation2] sm:$0x3] %v501
    %v503 = vld [vmem:[#allocation5] sm:$0xff]
    %v504 = vld [vmem:[#allocation5 + $0x8] sm:$0xff]
    %v505 = vld [vmem:[#allocation5 + $0x10] sm:$0xff]
    %v506 = vld [vmem:[#allocation5 + $0x18] sm:$0xff]
    %v507 = vld [vmem:[#allocation5 + $0x20] sm:$0xff]
    %v508 = vld [vmem:[#allocation5 + $0x28] sm:$0xff]
    %v509 = vld [vmem:[#allocation5 + $0x30] sm:$0xff]
    %v510 = vld [vmem:[#allocation5 + $0x38] sm:$0xff]
    %v511 = vld [vmem:[#allocation5 + $0x40] sm:$0xff]
    %v512 = vld [vmem:[#allocation5 + $0x48] sm:$0xff]
    %v513 = vld [vmem:[#allocation5 + $0x50] sm:$0xff]
    %v514 = vld [vmem:[#allocation5 + $0x58] sm:$0xff]
    %v515 = vld [vmem:[#allocation5 + $0x60] sm:$0xff]
    %v516 = vld [vmem:[#allocation5 + $0x68] sm:$0xff]
    %v517 = vld [vmem:[#allocation5 + $0x70] sm:$0xff]
    %v518 = vld [vmem:[#allocation5 + $0x78] sm:$0xff]
    %v519 = vld [vmem:[#allocation5 + $0x80] sm:$0xff]
    %v520 = vld [vmem:[#allocation5 + $0x88] sm:$0xff]
    %v521 = vld [vmem:[#allocation5 + $0x90] sm:$0xff]
    %v522 = vld [vmem:[#allocation5 + $0x98] sm:$0xff]
    %v523 = vld [vmem:[#allocation5 + $0xa0] sm:$0xff]
    %v524 = vld [vmem:[#allocation5 + $0xa8] sm:$0xff]
    %v525 = vld [vmem:[#allocation5 + $0xb0] sm:$0xff]
    %v526 = vld [vmem:[#allocation5 + $0xb8] sm:$0xff]
    %v527 = vld [vmem:[#allocation5 + $0xc0] sm:$0xff]
    %v528 = vld [vmem:[#allocation5 + $0xc8] sm:$0xff]
    %v529 = vld [vmem:[#allocation5 + $0xd0] sm:$0xff]
    %v530 = vld [vmem:[#allocation5 + $0xd8] sm:$0xff]
    %v531 = vld [vmem:[#allocation5 + $0xe0] sm:$0xff]
    %v532 = vld [vmem:[#allocation5 + $0xe8] sm:$0xff]
    %v533 = vld [vmem:[#allocation5 + $0xf0] sm:$0xff]
    %v534 = vld [vmem:[#allocation5 + $0xf8] sm:$0xff]
    %v535 = vld [vmem:[#allocation5 + $0x100] sm:$0xff]
    %v536 = vld [vmem:[#allocation5 + $0x108] sm:$0xff]
    %v537 = vld [vmem:[#allocation5 + $0x110] sm:$0xff]
    %v538 = vld [vmem:[#allocation5 + $0x118] sm:$0xff]
    %v539 = vld [vmem:[#allocation5 + $0x120] sm:$0xff]
    %v540 = vld [vmem:[#allocation5 + $0x128] sm:$0xff]
    %v541 = vld [vmem:[#allocation5 + $0x130] sm:$0xff]
    %v542 = vld [vmem:[#allocation5 + $0x138] sm:$0xff]
    %v543 = vld [vmem:[#allocation5 + $0x140] sm:$0xff]
    %v544 = vld [vmem:[#allocation5 + $0x148] sm:$0xff]
    %v545 = vld [vmem:[#allocation5 + $0x150] sm:$0xff]
    %v546 = vld [vmem:[#allocation5 + $0x158] sm:$0xff]
    %v547 = vld [vmem:[#allocation5 + $0x160] sm:$0xff]
    %v548 = vld [vmem:[#allocation5 + $0x168] sm:$0xff]
    %v549 = vld [vmem:[#allocation5 + $0x170] sm:$0xff]
    %v550 = vld [vmem:[#allocation5 + $0x178] sm:$0xff]
    %v551 = vld [vmem:[#allocation5 + $0x180] sm:$0xff]
    %v552 = vld [vmem:[#allocation5 + $0x188] sm:$0xff]
    %v553 = vld [vmem:[#allocation5 + $0x190] sm:$0xff]
    %v554 = vld [vmem:[#allocation5 + $0x198] sm:$0xff]
    %v555 = vld [vmem:[#allocation5 + $0x1a0] sm:$0xff]
    %v556 = vld [vmem:[#allocation5 + $0x1a8] sm:$0xff]
    %v557 = vld [vmem:[#allocation5 + $0x1b0] sm:$0xff]
    %v558 = vld [vmem:[#allocation5 + $0x1b8] sm:$0xff]
    %v559 = vld [vmem:[#allocation5 + $0x1c0] sm:$0xff]
    %v560 = vld [vmem:[#allocation5 + $0x1c8] sm:$0xff]
    %v561 = vld [vmem:[#allocation5 + $0x1d0] sm:$0xff]
    %v562 = vld [vmem:[#allocation5 + $0x1d8] sm:$0xff]
    %v563 = vld [vmem:[#allocation5 + $0x1e0] sm:$0xff]
    %v564 = vld [vmem:[#allocation5 + $0x1e8] sm:$0xff]
    %v565 = vld [vmem:[#allocation5 + $0x1f0] sm:$0xff]
    %v566 = vld [vmem:[#allocation5 + $0x1f8] sm:$0xff]
    %567 = vmatprep.subr.mxu0 %v504
    %568 = vmatpush1.msra.mxu0 %v503
    %569 = vmatprep.subr.mxu0 %v508
    %570 = vmatpush1.msra.mxu0 %v507
    %571 = vmatprep.subr.mxu0 %v512
    %572 = vmatpush1.msra.mxu0 %v511
    %573 = vmatprep.subr.mxu0 %v516
    %574 = vmatpush1.msra.mxu0 %v515
    %575 = vmatprep.subr.mxu0 %v520
    %576 = vmatpush1.msra.mxu0 %v519
    %577 = vmatprep.subr.mxu0 %v524
    %578 = vmatpush1.msra.mxu0 %v523
    %579 = vmatprep.subr.mxu0 %v528
    %580 = vmatpush1.msra.mxu0 %v527
    %581 = vmatprep.subr.mxu0 %v532
    %582 = vmatpush1.msra.mxu0 %v531
    %583 = vmatprep.subr.mxu0 %v536
    %584 = vmatpush1.msra.mxu0 %v535
    %585 = vmatprep.subr.mxu0 %v540
    %586 = vmatpush1.msra.mxu0 %v539
    %587 = vmatprep.subr.mxu0 %v544
    %588 = vmatpush1.msra.mxu0 %v543
    %589 = vmatprep.subr.mxu0 %v548
    %590 = vmatpush1.msra.mxu0 %v547
    %591 = vmatprep.subr.mxu0 %v552
    %592 = vmatpush1.msra.mxu0 %v551
    %593 = vmatprep.subr.mxu0 %v556
    %594 = vmatpush1.msra.mxu0 %v555
    %595 = vmatprep.subr.mxu0 %v560
    %596 = vmatpush1.msra.mxu0 %v559
    %597 = vmatprep.subr.mxu0 %v564
    %598 = vmatpush1.msra.mxu0 %v563
    %599 = vmatprep.subr.mxu0 0.0
    %600 = vmatpush1.msra.mxu0 0.0
    %601 = vmatprep.subr.mxu0 0.0
    %602 = vmatpush1.msra.mxu0 0.0
    %603 = vmatprep.subr.mxu0 0.0
    %604 = vmatpush1.msra.mxu0 0.0
    %605 = vmatprep.subr.mxu0 0.0
    %606 = vmatpush1.msra.mxu0 0.0
    %607 = vmatprep.subr.mxu0 0.0
    %608 = vmatpush1.msra.mxu0 0.0
    %609 = vmatprep.subr.mxu0 0.0
    %610 = vmatpush1.msra.mxu0 0.0
    %611 = vmatprep.subr.mxu0 0.0
    %612 = vmatpush1.msra.mxu0 0.0
    %613 = vmatprep.subr.mxu0 0.0
    %614 = vmatpush1.msra.mxu0 0.0
    %615 = vmatprep.subr.mxu0 0.0
    %616 = vmatpush1.msra.mxu0 0.0
    %617 = vmatprep.subr.mxu0 0.0
    %618 = vmatpush1.msra.mxu0 0.0
    %619 = vmatprep.subr.mxu0 0.0
    %620 = vmatpush1.msra.mxu0 0.0
    %621 = vmatprep.subr.mxu0 0.0
    %622 = vmatpush1.msra.mxu0 0.0
    %623 = vmatprep.subr.mxu0 0.0
    %624 = vmatpush1.msra.mxu0 0.0
    %625 = vmatprep.subr.mxu0 0.0
    %626 = vmatpush1.msra.mxu0 0.0
    %627 = vmatprep.subr.mxu0 0.0
    %628 = vmatpush1.msra.mxu0 0.0
    %629 = vmatprep.subr.mxu0 0.0
    %630 = vmatpush1.msra.mxu0 0.0
    %631 = vmatprep.mubr.f32.mxu0 0.0
    %632 = vmatmul.mubr.f32.gmra.mrb[0].mxu0 %v501
    %v633 = vpop.f32.mrb[0].mxu0
    %v634 = vadd.f32 0.0, %v633
    %v635 = vpop.f32.mrb[0].mxu0
    %v636 = vadd.f32 0.0, %v635
    %637 = vdwg.mxu0
    %638 = vmatprep.subr.mxu0 %v506
    %639 = vmatpush1.msra.mxu0 %v505
    %640 = vmatprep.subr.mxu0 %v510
    %641 = vmatpush1.msra.mxu0 %v509
    %642 = vmatprep.subr.mxu0 %v514
    %643 = vmatpush1.msra.mxu0 %v513
    %644 = vmatprep.subr.mxu0 %v518
    %645 = vmatpush1.msra.mxu0 %v517
    %646 = vmatprep.subr.mxu0 %v522
    %647 = vmatpush1.msra.mxu0 %v521
    %648 = vmatprep.subr.mxu0 %v526
    %649 = vmatpush1.msra.mxu0 %v525
    %650 = vmatprep.subr.mxu0 %v530
    %651 = vmatpush1.msra.mxu0 %v529
    %652 = vmatprep.subr.mxu0 %v534
    %653 = vmatpush1.msra.mxu0 %v533
    %654 = vmatprep.subr.mxu0 %v538
    %655 = vmatpush1.msra.mxu0 %v537
    %656 = vmatprep.subr.mxu0 %v542
    %657 = vmatpush1.msra.mxu0 %v541
    %658 = vmatprep.subr.mxu0 %v546
    %659 = vmatpush1.msra.mxu0 %v545
    %660 = vmatprep.subr.mxu0 %v550
    %661 = vmatpush1.msra.mxu0 %v549
    %662 = vmatprep.subr.mxu0 %v554
    %663 = vmatpush1.msra.mxu0 %v553
    %664 = vmatprep.subr.mxu0 %v558
    %665 = vmatpush1.msra.mxu0 %v557
    %666 = vmatprep.subr.mxu0 %v562
    %667 = vmatpush1.msra.mxu0 %v561
    %668 = vmatprep.subr.mxu0 %v566
    %669 = vmatpush1.msra.mxu0 %v565
    %670 = vmatprep.subr.mxu0 0.0
    %671 = vmatpush1.msra.mxu0 0.0
    %672 = vmatprep.subr.mxu0 0.0
    %673 = vmatpush1.msra.mxu0 0.0
    %674 = vmatprep.subr.mxu0 0.0
    %675 = vmatpush1.msra.mxu0 0.0
    %676 = vmatprep.subr.mxu0 0.0
    %677 = vmatpush1.msra.mxu0 0.0
    %678 = vmatprep.subr.mxu0 0.0
    %679 = vmatpush1.msra.mxu0 0.0
    %680 = vmatprep.subr.mxu0 0.0
    %681 = vmatpush1.msra.mxu0 0.0
    %682 = vmatprep.subr.mxu0 0.0
    %683 = vmatpush1.msra.mxu0 0.0
    %684 = vmatprep.subr.mxu0 0.0
    %685 = vmatpush1.msra.mxu0 0.0
    %686 = vmatprep.subr.mxu0 0.0
    %687 = vmatpush1.msra.mxu0 0.0
    %688 = vmatprep.subr.mxu0 0.0
    %689 = vmatpush1.msra.mxu0 0.0
    %690 = vmatprep.subr.mxu0 0.0
    %691 = vmatpush1.msra.mxu0 0.0
    %692 = vmatprep.subr.mxu0 0.0
    %693 = vmatpush1.msra.mxu0 0.0
    %694 = vmatprep.subr.mxu0 0.0
    %695 = vmatpush1.msra.mxu0 0.0
    %696 = vmatprep.subr.mxu0 0.0
    %697 = vmatpush1.msra.mxu0 0.0
    %698 = vmatprep.subr.mxu0 0.0
    %699 = vmatpush1.msra.mxu0 0.0
    %700 = vmatprep.subr.mxu0 0.0
    %701 = vmatpush1.msra.mxu0 0.0
    %702 = vmatprep.mubr.f32.mxu0 0.0
    %703 = vmatmul.mubr.f32.gmra.mrb[0].mxu0 %v501
    %v704 = vpop.f32.mrb[0].mxu0
    %v705 = vadd.f32 0.0, %v704
    %v706 = vpop.f32.mrb[0].mxu0
    %v707 = vadd.f32 0.0, %v706
    %708 = vdwg.mxu0
    %v713 = vrot.slane %v634, 6
    %v714 = vrot.slane %v636, 6
    %v715 = vrot.slane %v705, 6
    %v716 = vrot.slane %v707, 6
    %v721 = vadd.f32 %v181, %v713
    %v722 = vadd.f32 %v183, %v714
    %v723 = vadd.f32 %v258, %v715
    %v724 = vadd.f32 %v260, %v716
    %v725 = vxor.u32 %v721, 2147483648
    %v726 = vmul.f32 %v725, 1.442695
    %v727 = vpow.pop %v726
    %v728 = vadd.f32 %v727, 1.0
    %v729 = vrcp.pop %v728
    %v730 = vmul.f32 1.0, %v729
    %v731 = vxor.u32 %v722, 2147483648
    %v732 = vmul.f32 %v731, 1.442695
    %v733 = vpow.pop %v732
    %v734 = vadd.f32 %v733, 1.0
    %v735 = vrcp.pop %v734
    %v736 = vmul.f32 1.0, %v735
    %v737 = vtanh.pop %v723
    %v738 = vxor.u32 %v724, 2147483648
    %v739 = vmul.f32 %v738, 1.442695
    %v740 = vpow.pop %v739
    %v741 = vadd.f32 %v740, 1.0
    %v742 = vrcp.pop %v741
    %v743 = vmul.f32 1.0, %v742
    %v745 = vrot.slane %v499, 6
    %v747 = vmul.f32 %v736, %v745
    %v748 = vmul.f32 %v730, %v737
    %v749 = vadd.f32 %v747, %v748
    %v750 = vtanh.pop %v749
    %v751 = vmul.f32 %v743, %v750
    %752 = vst [vmem:[#allocation2] sm:$0xc] %v751
    %v753 = vld [vmem:[#allocation5] sm:$0xff]
    %v754 = vld [vmem:[#allocation5 + $0x8] sm:$0xff]
    %v755 = vld [vmem:[#allocation5 + $0x10] sm:$0xff]
    %v756 = vld [vmem:[#allocation5 + $0x18] sm:$0xff]
    %v757 = vld [vmem:[#allocation5 + $0x20] sm:$0xff]
    %v758 = vld [vmem:[#allocation5 + $0x28] sm:$0xff]
    %v759 = vld [vmem:[#allocation5 + $0x30] sm:$0xff]
    %v760 = vld [vmem:[#allocation5 + $0x38] sm:$0xff]
    %v761 = vld [vmem:[#allocation5 + $0x40] sm:$0xff]
    %v762 = vld [vmem:[#allocation5 + $0x48] sm:$0xff]
    %v763 = vld [vmem:[#allocation5 + $0x50] sm:$0xff]
    %v764 = vld [vmem:[#allocation5 + $0x58] sm:$0xff]
    %v765 = vld [vmem:[#allocation5 + $0x60] sm:$0xff]
    %v766 = vld [vmem:[#allocation5 + $0x68] sm:$0xff]
    %v767 = vld [vmem:[#allocation5 + $0x70] sm:$0xff]
    %v768 = vld [vmem:[#allocation5 + $0x78] sm:$0xff]
    %v769 = vld [vmem:[#allocation5 + $0x80] sm:$0xff]
    %v770 = vld [vmem:[#allocation5 + $0x88] sm:$0xff]
    %v771 = vld [vmem:[#allocation5 + $0x90] sm:$0xff]
    %v772 = vld [vmem:[#allocation5 + $0x98] sm:$0xff]
    %v773 = vld [vmem:[#allocation5 + $0xa0] sm:$0xff]
    %v774 = vld [vmem:[#allocation5 + $0xa8] sm:$0xff]
    %v775 = vld [vmem:[#allocation5 + $0xb0] sm:$0xff]
    %v776 = vld [vmem:[#allocation5 + $0xb8] sm:$0xff]
    %v777 = vld [vmem:[#allocation5 + $0xc0] sm:$0xff]
    %v778 = vld [vmem:[#allocation5 + $0xc8] sm:$0xff]
    %v779 = vld [vmem:[#allocation5 + $0xd0] sm:$0xff]
    %v780 = vld [vmem:[#allocation5 + $0xd8] sm:$0xff]
    %v781 = vld [vmem:[#allocation5 + $0xe0] sm:$0xff]
    %v782 = vld [vmem:[#allocation5 + $0xe8] sm:$0xff]
    %v783 = vld [vmem:[#allocation5 + $0xf0] sm:$0xff]
    %v784 = vld [vmem:[#allocation5 + $0xf8] sm:$0xff]
    %v785 = vld [vmem:[#allocation5 + $0x100] sm:$0xff]
    %v786 = vld [vmem:[#allocation5 + $0x108] sm:$0xff]
    %v787 = vld [vmem:[#allocation5 + $0x110] sm:$0xff]
    %v788 = vld [vmem:[#allocation5 + $0x118] sm:$0xff]
    %v789 = vld [vmem:[#allocation5 + $0x120] sm:$0xff]
    %v790 = vld [vmem:[#allocation5 + $0x128] sm:$0xff]
    %v791 = vld [vmem:[#allocation5 + $0x130] sm:$0xff]
    %v792 = vld [vmem:[#allocation5 + $0x138] sm:$0xff]
    %v793 = vld [vmem:[#allocation5 + $0x140] sm:$0xff]
    %v794 = vld [vmem:[#allocation5 + $0x148] sm:$0xff]
    %v795 = vld [vmem:[#allocation5 + $0x150] sm:$0xff]
    %v796 = vld [vmem:[#allocation5 + $0x158] sm:$0xff]
    %v797 = vld [vmem:[#allocation5 + $0x160] sm:$0xff]
    %v798 = vld [vmem:[#allocation5 + $0x168] sm:$0xff]
    %v799 = vld [vmem:[#allocation5 + $0x170] sm:$0xff]
    %v800 = vld [vmem:[#allocation5 + $0x178] sm:$0xff]
    %v801 = vld [vmem:[#allocation5 + $0x180] sm:$0xff]
    %v802 = vld [vmem:[#allocation5 + $0x188] sm:$0xff]
    %v803 = vld [vmem:[#allocation5 + $0x190] sm:$0xff]
    %v804 = vld [vmem:[#allocation5 + $0x198] sm:$0xff]
    %v805 = vld [vmem:[#allocation5 + $0x1a0] sm:$0xff]
    %v806 = vld [vmem:[#allocation5 + $0x1a8] sm:$0xff]
    %v807 = vld [vmem:[#allocation5 + $0x1b0] sm:$0xff]
    %v808 = vld [vmem:[#allocation5 + $0x1b8] sm:$0xff]
    %v809 = vld [vmem:[#allocation5 + $0x1c0] sm:$0xff]
    %v810 = vld [vmem:[#allocation5 + $0x1c8] sm:$0xff]
    %v811 = vld [vmem:[#allocation5 + $0x1d0] sm:$0xff]
    %v812 = vld [vmem:[#allocation5 + $0x1d8] sm:$0xff]
    %v813 = vld [vmem:[#allocation5 + $0x1e0] sm:$0xff]
    %v814 = vld [vmem:[#allocation5 + $0x1e8] sm:$0xff]
    %v815 = vld [vmem:[#allocation5 + $0x1f0] sm:$0xff]
    %v816 = vld [vmem:[#allocation5 + $0x1f8] sm:$0xff]
    %v818 = vrot.slane %v751, 2
    %820 = vmatprep.subr.mxu0 %v754
    %821 = vmatpush1.msra.mxu0 %v753
    %822 = vmatprep.subr.mxu0 %v758
    %823 = vmatpush1.msra.mxu0 %v757
    %824 = vmatprep.subr.mxu0 %v762
    %825 = vmatpush1.msra.mxu0 %v761
    %826 = vmatprep.subr.mxu0 %v766
    %827 = vmatpush1.msra.mxu0 %v765
    %828 = vmatprep.subr.mxu0 %v770
    %829 = vmatpush1.msra.mxu0 %v769
    %830 = vmatprep.subr.mxu0 %v774
    %831 = vmatpush1.msra.mxu0 %v773
    %832 = vmatprep.subr.mxu0 %v778
    %833 = vmatpush1.msra.mxu0 %v777
    %834 = vmatprep.subr.mxu0 %v782
    %835 = vmatpush1.msra.mxu0 %v781
    %836 = vmatprep.subr.mxu0 %v786
    %837 = vmatpush1.msra.mxu0 %v785
    %838 = vmatprep.subr.mxu0 %v790
    %839 = vmatpush1.msra.mxu0 %v789
    %840 = vmatprep.subr.mxu0 %v794
    %841 = vmatpush1.msra.mxu0 %v793
    %842 = vmatprep.subr.mxu0 %v798
    %843 = vmatpush1.msra.mxu0 %v797
    %844 = vmatprep.subr.mxu0 %v802
    %845 = vmatpush1.msra.mxu0 %v801
    %846 = vmatprep.subr.mxu0 %v806
    %847 = vmatpush1.msra.mxu0 %v805
    %848 = vmatprep.subr.mxu0 %v810
    %849 = vmatpush1.msra.mxu0 %v809
    %850 = vmatprep.subr.mxu0 %v814
    %851 = vmatpush1.msra.mxu0 %v813
    %852 = vmatprep.subr.mxu0 0.0
    %853 = vmatpush1.msra.mxu0 0.0
    %854 = vmatprep.subr.mxu0 0.0
    %855 = vmatpush1.msra.mxu0 0.0
    %856 = vmatprep.subr.mxu0 0.0
    %857 = vmatpush1.msra.mxu0 0.0
    %858 = vmatprep.subr.mxu0 0.0
    %859 = vmatpush1.msra.mxu0 0.0
    %860 = vmatprep.subr.mxu0 0.0
    %861 = vmatpush1.msra.mxu0 0.0
    %862 = vmatprep.subr.mxu0 0.0
    %863 = vmatpush1.msra.mxu0 0.0
    %864 = vmatprep.subr.mxu0 0.0
    %865 = vmatpush1.msra.mxu0 0.0
    %866 = vmatprep.subr.mxu0 0.0
    %867 = vmatpush1.msra.mxu0 0.0
    %868 = vmatprep.subr.mxu0 0.0
    %869 = vmatpush1.msra.mxu0 0.0
    %870 = vmatprep.subr.mxu0 0.0
    %871 = vmatpush1.msra.mxu0 0.0
    %872 = vmatprep.subr.mxu0 0.0
    %873 = vmatpush1.msra.mxu0 0.0
    %874 = vmatprep.subr.mxu0 0.0
    %875 = vmatpush1.msra.mxu0 0.0
    %876 = vmatprep.subr.mxu0 0.0
    %877 = vmatpush1.msra.mxu0 0.0
    %878 = vmatprep.subr.mxu0 0.0
    %879 = vmatpush1.msra.mxu0 0.0
    %880 = vmatprep.subr.mxu0 0.0
    %881 = vmatpush1.msra.mxu0 0.0
    %882 = vmatprep.subr.mxu0 0.0
    %883 = vmatpush1.msra.mxu0 0.0
    %884 = vmatprep.mubr.f32.mxu0 0.0
    %885 = vmatmul.mubr.f32.gmra.mrb[0].mxu0 %v818
    %v886 = vpop.f32.mrb[0].mxu0
    %v887 = vadd.f32 0.0, %v886
    %v888 = vpop.f32.mrb[0].mxu0
    %v889 = vadd.f32 0.0, %v888
    %890 = vdwg.mxu0
    %891 = vmatprep.subr.mxu0 %v756
    %892 = vmatpush1.msra.mxu0 %v755
    %893 = vmatprep.subr.mxu0 %v760
    %894 = vmatpush1.msra.mxu0 %v759
    %895 = vmatprep.subr.mxu0 %v764
    %896 = vmatpush1.msra.mxu0 %v763
    %897 = vmatprep.subr.mxu0 %v768
    %898 = vmatpush1.msra.mxu0 %v767
    %899 = vmatprep.subr.mxu0 %v772
    %900 = vmatpush1.msra.mxu0 %v771
    %901 = vmatprep.subr.mxu0 %v776
    %902 = vmatpush1.msra.mxu0 %v775
    %903 = vmatprep.subr.mxu0 %v780
    %904 = vmatpush1.msra.mxu0 %v779
    %905 = vmatprep.subr.mxu0 %v784
    %906 = vmatpush1.msra.mxu0 %v783
    %907 = vmatprep.subr.mxu0 %v788
    %908 = vmatpush1.msra.mxu0 %v787
    %909 = vmatprep.subr.mxu0 %v792
    %910 = vmatpush1.msra.mxu0 %v791
    %911 = vmatprep.subr.mxu0 %v796
    %912 = vmatpush1.msra.mxu0 %v795
    %913 = vmatprep.subr.mxu0 %v800
    %914 = vmatpush1.msra.mxu0 %v799
    %915 = vmatprep.subr.mxu0 %v804
    %916 = vmatpush1.msra.mxu0 %v803
    %917 = vmatprep.subr.mxu0 %v808
    %918 = vmatpush1.msra.mxu0 %v807
    %919 = vmatprep.subr.mxu0 %v812
    %920 = vmatpush1.msra.mxu0 %v811
    %921 = vmatprep.subr.mxu0 %v816
    %922 = vmatpush1.msra.mxu0 %v815
    %923 = vmatprep.subr.mxu0 0.0
    %924 = vmatpush1.msra.mxu0 0.0
    %925 = vmatprep.subr.mxu0 0.0
    %926 = vmatpush1.msra.mxu0 0.0
    %927 = vmatprep.subr.mxu0 0.0
    %928 = vmatpush1.msra.mxu0 0.0
    %929 = vmatprep.subr.mxu0 0.0
    %930 = vmatpush1.msra.mxu0 0.0
    %931 = vmatprep.subr.mxu0 0.0
    %932 = vmatpush1.msra.mxu0 0.0
    %933 = vmatprep.subr.mxu0 0.0
    %934 = vmatpush1.msra.mxu0 0.0
    %935 = vmatprep.subr.mxu0 0.0
    %936 = vmatpush1.msra.mxu0 0.0
    %937 = vmatprep.subr.mxu0 0.0
    %938 = vmatpush1.msra.mxu0 0.0
    %939 = vmatprep.subr.mxu0 0.0
    %940 = vmatpush1.msra.mxu0 0.0
    %941 = vmatprep.subr.mxu0 0.0
    %942 = vmatpush1.msra.mxu0 0.0
    %943 = vmatprep.subr.mxu0 0.0
    %944 = vmatpush1.msra.mxu0 0.0
    %945 = vmatprep.subr.mxu0 0.0
    %946 = vmatpush1.msra.mxu0 0.0
    %947 = vmatprep.subr.mxu0 0.0
    %948 = vmatpush1.msra.mxu0 0.0
    %949 = vmatprep.subr.mxu0 0.0
    %950 = vmatpush1.msra.mxu0 0.0
    %951 = vmatprep.subr.mxu0 0.0
    %952 = vmatpush1.msra.mxu0 0.0
    %953 = vmatprep.subr.mxu0 0.0
    %954 = vmatpush1.msra.mxu0 0.0
    %955 = vmatprep.mubr.f32.mxu0 0.0
    %956 = vmatmul.mubr.f32.gmra.mrb[0].mxu0 %v818
    %v957 = vpop.f32.mrb[0].mxu0
    %v958 = vadd.f32 0.0, %v957
    %v959 = vpop.f32.mrb[0].mxu0
    %v960 = vadd.f32 0.0, %v959
    %961 = vdwg.mxu0
    %v966 = vrot.slane %v887, 4
    %v967 = vrot.slane %v889, 4
    %v968 = vrot.slane %v958, 4
    %v969 = vrot.slane %v960, 4
    %v974 = vadd.f32 %v181, %v966
    %v975 = vadd.f32 %v183, %v967
    %v976 = vadd.f32 %v258, %v968
    %v977 = vadd.f32 %v260, %v969
    %v978 = vxor.u32 %v974, 2147483648
    %v979 = vmul.f32 %v978, 1.442695
    %v980 = vpow.pop %v979
    %v981 = vadd.f32 %v980, 1.0
    %v982 = vrcp.pop %v981
    %v983 = vmul.f32 1.0, %v982
    %v984 = vxor.u32 %v975, 2147483648
    %v985 = vmul.f32 %v984, 1.442695
    %v986 = vpow.pop %v985
    %v987 = vadd.f32 %v986, 1.0
    %v988 = vrcp.pop %v987
    %v989 = vmul.f32 1.0, %v988
    %v990 = vtanh.pop %v976
    %v991 = vxor.u32 %v977, 2147483648
    %v992 = vmul.f32 %v991, 1.442695
    %v993 = vpow.pop %v992
    %v994 = vadd.f32 %v993, 1.0
    %v995 = vrcp.pop %v994
    %v996 = vmul.f32 1.0, %v995
    %v998 = vrot.slane %v749, 6
    %v1000 = vmul.f32 %v989, %v998
    %v1001 = vmul.f32 %v983, %v990
    %v1002 = vadd.f32 %v1000, %v1001
    %v1003 = vtanh.pop %v1002
    %v1004 = vmul.f32 %v996, %v1003
    %1005 = vst [vmem:[#allocation2] sm:$0x30] %v1004
    %v1006 = vld [vmem:[#allocation5] sm:$0xff]
    %v1007 = vld [vmem:[#allocation5 + $0x8] sm:$0xff]
    %v1008 = vld [vmem:[#allocation5 + $0x10] sm:$0xff]
    %v1009 = vld [vmem:[#allocation5 + $0x18] sm:$0xff]
    %v1010 = vld [vmem:[#allocation5 + $0x20] sm:$0xff]
    %v1011 = vld [vmem:[#allocation5 + $0x28] sm:$0xff]
    %v1012 = vld [vmem:[#allocation5 + $0x30] sm:$0xff]
    %v1013 = vld [vmem:[#allocation5 + $0x38] sm:$0xff]
    %v1014 = vld [vmem:[#allocation5 + $0x40] sm:$0xff]
    %v1015 = vld [vmem:[#allocation5 + $0x48] sm:$0xff]
    %v1016 = vld [vmem:[#allocation5 + $0x50] sm:$0xff]
    %v1017 = vld [vmem:[#allocation5 + $0x58] sm:$0xff]
    %v1018 = vld [vmem:[#allocation5 + $0x60] sm:$0xff]
    %v1019 = vld [vmem:[#allocation5 + $0x68] sm:$0xff]
    %v1020 = vld [vmem:[#allocation5 + $0x70] sm:$0xff]
    %v1021 = vld [vmem:[#allocation5 + $0x78] sm:$0xff]
    %v1022 = vld [vmem:[#allocation5 + $0x80] sm:$0xff]
    %v1023 = vld [vmem:[#allocation5 + $0x88] sm:$0xff]
    %v1024 = vld [vmem:[#allocation5 + $0x90] sm:$0xff]
    %v1025 = vld [vmem:[#allocation5 + $0x98] sm:$0xff]
    %v1026 = vld [vmem:[#allocation5 + $0xa0] sm:$0xff]
    %v1027 = vld [vmem:[#allocation5 + $0xa8] sm:$0xff]
    %v1028 = vld [vmem:[#allocation5 + $0xb0] sm:$0xff]
    %v1029 = vld [vmem:[#allocation5 + $0xb8] sm:$0xff]
    %v1030 = vld [vmem:[#allocation5 + $0xc0] sm:$0xff]
    %v1031 = vld [vmem:[#allocation5 + $0xc8] sm:$0xff]
    %v1032 = vld [vmem:[#allocation5 + $0xd0] sm:$0xff]
    %v1033 = vld [vmem:[#allocation5 + $0xd8] sm:$0xff]
    %v1034 = vld [vmem:[#allocation5 + $0xe0] sm:$0xff]
    %v1035 = vld [vmem:[#allocation5 + $0xe8] sm:$0xff]
    %v1036 = vld [vmem:[#allocation5 + $0xf0] sm:$0xff]
    %v1037 = vld [vmem:[#allocation5 + $0xf8] sm:$0xff]
    %v1038 = vld [vmem:[#allocation5 + $0x100] sm:$0xff]
    %v1039 = vld [vmem:[#allocation5 + $0x108] sm:$0xff]
    %v1040 = vld [vmem:[#allocation5 + $0x110] sm:$0xff]
    %v1041 = vld [vmem:[#allocation5 + $0x118] sm:$0xff]
    %v1042 = vld [vmem:[#allocation5 + $0x120] sm:$0xff]
    %v1043 = vld [vmem:[#allocation5 + $0x128] sm:$0xff]
    %v1044 = vld [vmem:[#allocation5 + $0x130] sm:$0xff]
    %v1045 = vld [vmem:[#allocation5 + $0x138] sm:$0xff]
    %v1046 = vld [vmem:[#allocation5 + $0x140] sm:$0xff]
    %v1047 = vld [vmem:[#allocation5 + $0x148] sm:$0xff]
    %v1048 = vld [vmem:[#allocation5 + $0x150] sm:$0xff]
    %v1049 = vld [vmem:[#allocation5 + $0x158] sm:$0xff]
    %v1050 = vld [vmem:[#allocation5 + $0x160] sm:$0xff]
    %v1051 = vld [vmem:[#allocation5 + $0x168] sm:$0xff]
    %v1052 = vld [vmem:[#allocation5 + $0x170] sm:$0xff]
    %v1053 = vld [vmem:[#allocation5 + $0x178] sm:$0xff]
    %v1054 = vld [vmem:[#allocation5 + $0x180] sm:$0xff]
    %v1055 = vld [vmem:[#allocation5 + $0x188] sm:$0xff]
    %v1056 = vld [vmem:[#allocation5 + $0x190] sm:$0xff]
    %v1057 = vld [vmem:[#allocation5 + $0x198] sm:$0xff]
    %v1058 = vld [vmem:[#allocation5 + $0x1a0] sm:$0xff]
    %v1059 = vld [vmem:[#allocation5 + $0x1a8] sm:$0xff]
    %v1060 = vld [vmem:[#allocation5 + $0x1b0] sm:$0xff]
    %v1061 = vld [vmem:[#allocation5 + $0x1b8] sm:$0xff]
    %v1062 = vld [vmem:[#allocation5 + $0x1c0] sm:$0xff]
    %v1063 = vld [vmem:[#allocation5 + $0x1c8] sm:$0xff]
    %v1064 = vld [vmem:[#allocation5 + $0x1d0] sm:$0xff]
    %v1065 = vld [vmem:[#allocation5 + $0x1d8] sm:$0xff]
    %v1066 = vld [vmem:[#allocation5 + $0x1e0] sm:$0xff]
    %v1067 = vld [vmem:[#allocation5 + $0x1e8] sm:$0xff]
    %v1068 = vld [vmem:[#allocation5 + $0x1f0] sm:$0xff]
    %v1069 = vld [vmem:[#allocation5 + $0x1f8] sm:$0xff]
    %v1071 = vrot.slane %v1004, 4
    %1073 = vmatprep.subr.mxu0 %v1007
    %1074 = vmatpush1.msra.mxu0 %v1006
    %1075 = vmatprep.subr.mxu0 %v1011
    %1076 = vmatpush1.msra.mxu0 %v1010
    %1077 = vmatprep.subr.mxu0 %v1015
    %1078 = vmatpush1.msra.mxu0 %v1014
    %1079 = vmatprep.subr.mxu0 %v1019
    %1080 = vmatpush1.msra.mxu0 %v1018
    %1081 = vmatprep.subr.mxu0 %v1023
    %1082 = vmatpush1.msra.mxu0 %v1022
    %1083 = vmatprep.subr.mxu0 %v1027
    %1084 = vmatpush1.msra.mxu0 %v1026
    %1085 = vmatprep.subr.mxu0 %v1031
    %1086 = vmatpush1.msra.mxu0 %v1030
    %1087 = vmatprep.subr.mxu0 %v1035
    %1088 = vmatpush1.msra.mxu0 %v1034
    %1089 = vmatprep.subr.mxu0 %v1039
    %1090 = vmatpush1.msra.mxu0 %v1038
    %1091 = vmatprep.subr.mxu0 %v1043
    %1092 = vmatpush1.msra.mxu0 %v1042
    %1093 = vmatprep.subr.mxu0 %v1047
    %1094 = vmatpush1.msra.mxu0 %v1046
    %1095 = vmatprep.subr.mxu0 %v1051
    %1096 = vmatpush1.msra.mxu0 %v1050
    %1097 = vmatprep.subr.mxu0 %v1055
    %1098 = vmatpush1.msra.mxu0 %v1054
    %1099 = vmatprep.subr.mxu0 %v1059
    %1100 = vmatpush1.msra.mxu0 %v1058
    %1101 = vmatprep.subr.mxu0 %v1063
    %1102 = vmatpush1.msra.mxu0 %v1062
    %1103 = vmatprep.subr.mxu0 %v1067
    %1104 = vmatpush1.msra.mxu0 %v1066
    %1105 = vmatprep.subr.mxu0 0.0
    %1106 = vmatpush1.msra.mxu0 0.0
    %1107 = vmatprep.subr.mxu0 0.0
    %1108 = vmatpush1.msra.mxu0 0.0
    %1109 = vmatprep.subr.mxu0 0.0
    %1110 = vmatpush1.msra.mxu0 0.0
    %1111 = vmatprep.subr.mxu0 0.0
    %1112 = vmatpush1.msra.mxu0 0.0
    %1113 = vmatprep.subr.mxu0 0.0
    %1114 = vmatpush1.msra.mxu0 0.0
    %1115 = vmatprep.subr.mxu0 0.0
    %1116 = vmatpush1.msra.mxu0 0.0
    %1117 = vmatprep.subr.mxu0 0.0
    %1118 = vmatpush1.msra.mxu0 0.0
    %1119 = vmatprep.subr.mxu0 0.0
    %1120 = vmatpush1.msra.mxu0 0.0
    %1121 = vmatprep.subr.mxu0 0.0
    %1122 = vmatpush1.msra.mxu0 0.0
    %1123 = vmatprep.subr.mxu0 0.0
    %1124 = vmatpush1.msra.mxu0 0.0
    %1125 = vmatprep.subr.mxu0 0.0
    %1126 = vmatpush1.msra.mxu0 0.0
    %1127 = vmatprep.subr.mxu0 0.0
    %1128 = vmatpush1.msra.mxu0 0.0
    %1129 = vmatprep.subr.mxu0 0.0
    %1130 = vmatpush1.msra.mxu0 0.0
    %1131 = vmatprep.subr.mxu0 0.0
    %1132 = vmatpush1.msra.mxu0 0.0
    %1133 = vmatprep.subr.mxu0 0.0
    %1134 = vmatpush1.msra.mxu0 0.0
    %1135 = vmatprep.subr.mxu0 0.0
    %1136 = vmatpush1.msra.mxu0 0.0
    %1137 = vmatprep.mubr.f32.mxu0 0.0
    %1138 = vmatmul.mubr.f32.gmra.mrb[0].mxu0 %v1071
    %v1139 = vpop.f32.mrb[0].mxu0
    %v1140 = vadd.f32 0.0, %v1139
    %v1141 = vpop.f32.mrb[0].mxu0
    %v1142 = vadd.f32 0.0, %v1141
    %1143 = vdwg.mxu0
    %1144 = vmatprep.subr.mxu0 %v1009
    %1145 = vmatpush1.msra.mxu0 %v1008
    %1146 = vmatprep.subr.mxu0 %v1013
    %1147 = vmatpush1.msra.mxu0 %v1012
    %1148 = vmatprep.subr.mxu0 %v1017
    %1149 = vmatpush1.msra.mxu0 %v1016
    %1150 = vmatprep.subr.mxu0 %v1021
    %1151 = vmatpush1.msra.mxu0 %v1020
    %1152 = vmatprep.subr.mxu0 %v1025
    %1153 = vmatpush1.msra.mxu0 %v1024
    %1154 = vmatprep.subr.mxu0 %v1029
    %1155 = vmatpush1.msra.mxu0 %v1028
    %1156 = vmatprep.subr.mxu0 %v1033
    %1157 = vmatpush1.msra.mxu0 %v1032
    %1158 = vmatprep.subr.mxu0 %v1037
    %1159 = vmatpush1.msra.mxu0 %v1036
    %1160 = vmatprep.subr.mxu0 %v1041
    %1161 = vmatpush1.msra.mxu0 %v1040
    %1162 = vmatprep.subr.mxu0 %v1045
    %1163 = vmatpush1.msra.mxu0 %v1044
    %1164 = vmatprep.subr.mxu0 %v1049
    %1165 = vmatpush1.msra.mxu0 %v1048
    %1166 = vmatprep.subr.mxu0 %v1053
    %1167 = vmatpush1.msra.mxu0 %v1052
    %1168 = vmatprep.subr.mxu0 %v1057
    %1169 = vmatpush1.msra.mxu0 %v1056
    %1170 = vmatprep.subr.mxu0 %v1061
    %1171 = vmatpush1.msra.mxu0 %v1060
    %1172 = vmatprep.subr.mxu0 %v1065
    %1173 = vmatpush1.msra.mxu0 %v1064
    %1174 = vmatprep.subr.mxu0 %v1069
    %1175 = vmatpush1.msra.mxu0 %v1068
    %1176 = vmatprep.subr.mxu0 0.0
    %1177 = vmatpush1.msra.mxu0 0.0
    %1178 = vmatprep.subr.mxu0 0.0
    %1179 = vmatpush1.msra.mxu0 0.0
    %1180 = vmatprep.subr.mxu0 0.0
    %1181 = vmatpush1.msra.mxu0 0.0
    %1182 = vmatprep.subr.mxu0 0.0
    %1183 = vmatpush1.msra.mxu0 0.0
    %1184 = vmatprep.subr.mxu0 0.0
    %1185 = vmatpush1.msra.mxu0 0.0
    %1186 = vmatprep.subr.mxu0 0.0
    %1187 = vmatpush1.msra.mxu0 0.0
    %1188 = vmatprep.subr.mxu0 0.0
    %1189 = vmatpush1.msra.mxu0 0.0
    %1190 = vmatprep.subr.mxu0 0.0
    %1191 = vmatpush1.msra.mxu0 0.0
    %1192 = vmatprep.subr.mxu0 0.0
    %1193 = vmatpush1.msra.mxu0 0.0
    %1194 = vmatprep.subr.mxu0 0.0
    %1195 = vmatpush1.msra.mxu0 0.0
    %1196 = vmatprep.subr.mxu0 0.0
    %1197 = vmatpush1.msra.mxu0 0.0
    %1198 = vmatprep.subr.mxu0 0.0
    %1199 = vmatpush1.msra.mxu0 0.0
    %1200 = vmatprep.subr.mxu0 0.0
    %1201 = vmatpush1.msra.mxu0 0.0
    %1202 = vmatprep.subr.mxu0 0.0
    %1203 = vmatpush1.msra.mxu0 0.0
    %1204 = vmatprep.subr.mxu0 0.0
    %1205 = vmatpush1.msra.mxu0 0.0
    %1206 = vmatprep.subr.mxu0 0.0
    %1207 = vmatpush1.msra.mxu0 0.0
    %1208 = vmatprep.mubr.f32.mxu0 0.0
    %1209 = vmatmul.mubr.f32.gmra.mrb[0].mxu0 %v1071
    %v1210 = vpop.f32.mrb[0].mxu0
    %v1211 = vadd.f32 0.0, %v1210
    %v1212 = vpop.f32.mrb[0].mxu0
    %v1213 = vadd.f32 0.0, %v1212
    %1214 = vdwg.mxu0
    %v1219 = vrot.slane %v1140, 2
    %v1220 = vrot.slane %v1142, 2
    %v1221 = vrot.slane %v1211, 2
    %v1222 = vrot.slane %v1213, 2
    %v1227 = vadd.f32 %v181, %v1219
    %v1228 = vadd.f32 %v183, %v1220
    %v1229 = vadd.f32 %v258, %v1221
    %v1230 = vadd.f32 %v260, %v1222
    %v1231 = vxor.u32 %v1227, 2147483648
    %v1232 = vmul.f32 %v1231, 1.442695
    %v1233 = vpow.pop %v1232
    %v1234 = vadd.f32 %v1233, 1.0
    %v1235 = vrcp.pop %v1234
    %v1236 = vmul.f32 1.0, %v1235
    %v1237 = vxor.u32 %v1228, 2147483648
    %v1238 = vmul.f32 %v1237, 1.442695
    %v1239 = vpow.pop %v1238
    %v1240 = vadd.f32 %v1239, 1.0
    %v1241 = vrcp.pop %v1240
    %v1242 = vmul.f32 1.0, %v1241
    %v1243 = vtanh.pop %v1229
    %v1244 = vxor.u32 %v1230, 2147483648
    %v1245 = vmul.f32 %v1244, 1.442695
    %v1246 = vpow.pop %v1245
    %v1247 = vadd.f32 %v1246, 1.0
    %v1248 = vrcp.pop %v1247
    %v1249 = vmul.f32 1.0, %v1248
    %v1251 = vrot.slane %v1002, 6
    %v1253 = vmul.f32 %v1242, %v1251
    %v1254 = vmul.f32 %v1236, %v1243
    %v1255 = vadd.f32 %v1253, %v1254
    %v1256 = vtanh.pop %v1255
    %v1257 = vmul.f32 %v1249, %v1256
    %1258 = vst [vmem:[#allocation2] sm:$0xc0] %v1257
    %v1259 = vld [vmem:[#allocation5] sm:$0xff]
    %v1260 = vld [vmem:[#allocation5 + $0x8] sm:$0xff]
    %v1261 = vld [vmem:[#allocation5 + $0x10] sm:$0xff]
    %v1262 = vld [vmem:[#allocation5 + $0x18] sm:$0xff]
    %v1263 = vld [vmem:[#allocation5 + $0x20] sm:$0xff]
    %v1264 = vld [vmem:[#allocation5 + $0x28] sm:$0xff]
    %v1265 = vld [vmem:[#allocation5 + $0x30] sm:$0xff]
    %v1266 = vld [vmem:[#allocation5 + $0x38] sm:$0xff]
    %v1267 = vld [vmem:[#allocation5 + $0x40] sm:$0xff]
    %v1268 = vld [vmem:[#allocation5 + $0x48] sm:$0xff]
    %v1269 = vld [vmem:[#allocation5 + $0x50] sm:$0xff]
    %v1270 = vld [vmem:[#allocation5 + $0x58] sm:$0xff]
    %v1271 = vld [vmem:[#allocation5 + $0x60] sm:$0xff]
    %v1272 = vld [vmem:[#allocation5 + $0x68] sm:$0xff]
    %v1273 = vld [vmem:[#allocation5 + $0x70] sm:$0xff]
    %v1274 = vld [vmem:[#allocation5 + $0x78] sm:$0xff]
    %v1275 = vld [vmem:[#allocation5 + $0x80] sm:$0xff]
    %v1276 = vld [vmem:[#allocation5 + $0x88] sm:$0xff]
    %v1277 = vld [vmem:[#allocation5 + $0x90] sm:$0xff]
    %v1278 = vld [vmem:[#allocation5 + $0x98] sm:$0xff]
    %v1279 = vld [vmem:[#allocation5 + $0xa0] sm:$0xff]
    %v1280 = vld [vmem:[#allocation5 + $0xa8] sm:$0xff]
    %v1281 = vld [vmem:[#allocation5 + $0xb0] sm:$0xff]
    %v1282 = vld [vmem:[#allocation5 + $0xb8] sm:$0xff]
    %v1283 = vld [vmem:[#allocation5 + $0xc0] sm:$0xff]
    %v1284 = vld [vmem:[#allocation5 + $0xc8] sm:$0xff]
    %v1285 = vld [vmem:[#allocation5 + $0xd0] sm:$0xff]
    %v1286 = vld [vmem:[#allocation5 + $0xd8] sm:$0xff]
    %v1287 = vld [vmem:[#allocation5 + $0xe0] sm:$0xff]
    %v1288 = vld [vmem:[#allocation5 + $0xe8] sm:$0xff]
    %v1289 = vld [vmem:[#allocation5 + $0xf0] sm:$0xff]
    %v1290 = vld [vmem:[#allocation5 + $0xf8] sm:$0xff]
    %v1291 = vld [vmem:[#allocation5 + $0x100] sm:$0xff]
    %v1292 = vld [vmem:[#allocation5 + $0x108] sm:$0xff]
    %v1293 = vld [vmem:[#allocation5 + $0x110] sm:$0xff]
    %v1294 = vld [vmem:[#allocation5 + $0x118] sm:$0xff]
    %v1295 = vld [vmem:[#allocation5 + $0x120] sm:$0xff]
    %v1296 = vld [vmem:[#allocation5 + $0x128] sm:$0xff]
    %v1297 = vld [vmem:[#allocation5 + $0x130] sm:$0xff]
    %v1298 = vld [vmem:[#allocation5 + $0x138] sm:$0xff]
    %v1299 = vld [vmem:[#allocation5 + $0x140] sm:$0xff]
    %v1300 = vld [vmem:[#allocation5 + $0x148] sm:$0xff]
    %v1301 = vld [vmem:[#allocation5 + $0x150] sm:$0xff]
    %v1302 = vld [vmem:[#allocation5 + $0x158] sm:$0xff]
    %v1303 = vld [vmem:[#allocation5 + $0x160] sm:$0xff]
    %v1304 = vld [vmem:[#allocation5 + $0x168] sm:$0xff]
    %v1305 = vld [vmem:[#allocation5 + $0x170] sm:$0xff]
    %v1306 = vld [vmem:[#allocation5 + $0x178] sm:$0xff]
    %v1307 = vld [vmem:[#allocation5 + $0x180] sm:$0xff]
    %v1308 = vld [vmem:[#allocation5 + $0x188] sm:$0xff]
    %v1309 = vld [vmem:[#allocation5 + $0x190] sm:$0xff]
    %v1310 = vld [vmem:[#allocation5 + $0x198] sm:$0xff]
    %v1311 = vld [vmem:[#allocation5 + $0x1a0] sm:$0xff]
    %v1312 = vld [vmem:[#allocation5 + $0x1a8] sm:$0xff]
    %v1313 = vld [vmem:[#allocation5 + $0x1b0] sm:$0xff]
    %v1314 = vld [vmem:[#allocation5 + $0x1b8] sm:$0xff]
    %v1315 = vld [vmem:[#allocation5 + $0x1c0] sm:$0xff]
    %v1316 = vld [vmem:[#allocation5 + $0x1c8] sm:$0xff]
    %v1317 = vld [vmem:[#allocation5 + $0x1d0] sm:$0xff]
    %v1318 = vld [vmem:[#allocation5 + $0x1d8] sm:$0xff]
    %v1319 = vld [vmem:[#allocation5 + $0x1e0] sm:$0xff]
    %v1320 = vld [vmem:[#allocation5 + $0x1e8] sm:$0xff]
    %v1321 = vld [vmem:[#allocation5 + $0x1f0] sm:$0xff]
    %v1322 = vld [vmem:[#allocation5 + $0x1f8] sm:$0xff]
    %v1324 = vrot.slane %v1257, 6
    %1326 = vmatprep.subr.mxu0 %v1260
    %1327 = vmatpush1.msra.mxu0 %v1259
    %1328 = vmatprep.subr.mxu0 %v1264
    %1329 = vmatpush1.msra.mxu0 %v1263
    %1330 = vmatprep.subr.mxu0 %v1268
    %1331 = vmatpush1.msra.mxu0 %v1267
    %1332 = vmatprep.subr.mxu0 %v1272
    %1333 = vmatpush1.msra.mxu0 %v1271
    %1334 = vmatprep.subr.mxu0 %v1276
    %1335 = vmatpush1.msra.mxu0 %v1275
    %1336 = vmatprep.subr.mxu0 %v1280
    %1337 = vmatpush1.msra.mxu0 %v1279
    %1338 = vmatprep.subr.mxu0 %v1284
    %1339 = vmatpush1.msra.mxu0 %v1283
    %1340 = vmatprep.subr.mxu0 %v1288
    %1341 = vmatpush1.msra.mxu0 %v1287
    %1342 = vmatprep.subr.mxu0 %v1292
    %1343 = vmatpush1.msra.mxu0 %v1291
    %1344 = vmatprep.subr.mxu0 %v1296
    %1345 = vmatpush1.msra.mxu0 %v1295
    %1346 = vmatprep.subr.mxu0 %v1300
    %1347 = vmatpush1.msra.mxu0 %v1299
    %1348 = vmatprep.subr.mxu0 %v1304
    %1349 = vmatpush1.msra.mxu0 %v1303
    %1350 = vmatprep.subr.mxu0 %v1308
    %1351 = vmatpush1.msra.mxu0 %v1307
    %1352 = vmatprep.subr.mxu0 %v1312
    %1353 = vmatpush1.msra.mxu0 %v1311
    %1354 = vmatprep.subr.mxu0 %v1316
    %1355 = vmatpush1.msra.mxu0 %v1315
    %1356 = vmatprep.subr.mxu0 %v1320
    %1357 = vmatpush1.msra.mxu0 %v1319
    %1358 = vmatprep.subr.mxu0 0.0
    %1359 = vmatpush1.msra.mxu0 0.0
    %1360 = vmatprep.subr.mxu0 0.0
    %1361 = vmatpush1.msra.mxu0 0.0
    %1362 = vmatprep.subr.mxu0 0.0
    %1363 = vmatpush1.msra.mxu0 0.0
    %1364 = vmatprep.subr.mxu0 0.0
    %1365 = vmatpush1.msra.mxu0 0.0
    %1366 = vmatprep.subr.mxu0 0.0
    %1367 = vmatpush1.msra.mxu0 0.0
    %1368 = vmatprep.subr.mxu0 0.0
    %1369 = vmatpush1.msra.mxu0 0.0
    %1370 = vmatprep.subr.mxu0 0.0
    %1371 = vmatpush1.msra.mxu0 0.0
    %1372 = vmatprep.subr.mxu0 0.0
    %1373 = vmatpush1.msra.mxu0 0.0
    %1374 = vmatprep.subr.mxu0 0.0
    %1375 = vmatpush1.msra.mxu0 0.0
    %1376 = vmatprep.subr.mxu0 0.0
    %1377 = vmatpush1.msra.mxu0 0.0
    %1378 = vmatprep.subr.mxu0 0.0
    %1379 = vmatpush1.msra.mxu0 0.0
    %1380 = vmatprep.subr.mxu0 0.0
    %1381 = vmatpush1.msra.mxu0 0.0
    %1382 = vmatprep.subr.mxu0 0.0
    %1383 = vmatpush1.msra.mxu0 0.0
    %1384 = vmatprep.subr.mxu0 0.0
    %1385 = vmatpush1.msra.mxu0 0.0
    %1386 = vmatprep.subr.mxu0 0.0
    %1387 = vmatpush1.msra.mxu0 0.0
    %1388 = vmatprep.subr.mxu0 0.0
    %1389 = vmatpush1.msra.mxu0 0.0
    %1390 = vmatprep.mubr.f32.mxu0 0.0
    %1391 = vmatmul.mubr.f32.gmra.mrb[0].mxu0 %v1324
    %v1392 = vpop.f32.mrb[0].mxu0
    %v1393 = vadd.f32 0.0, %v1392
    %v1394 = vpop.f32.mrb[0].mxu0
    %v1395 = vadd.f32 0.0, %v1394
    %1396 = vdwg.mxu0
    %1397 = vmatprep.subr.mxu0 %v1262
    %1398 = vmatpush1.msra.mxu0 %v1261
    %1399 = vmatprep.subr.mxu0 %v1266
    %1400 = vmatpush1.msra.mxu0 %v1265
    %1401 = vmatprep.subr.mxu0 %v1270
    %1402 = vmatpush1.msra.mxu0 %v1269
    %1403 = vmatprep.subr.mxu0 %v1274
    %1404 = vmatpush1.msra.mxu0 %v1273
    %1405 = vmatprep.subr.mxu0 %v1278
    %1406 = vmatpush1.msra.mxu0 %v1277
    %1407 = vmatprep.subr.mxu0 %v1282
    %1408 = vmatpush1.msra.mxu0 %v1281
    %1409 = vmatprep.subr.mxu0 %v1286
    %1410 = vmatpush1.msra.mxu0 %v1285
    %1411 = vmatprep.subr.mxu0 %v1290
    %1412 = vmatpush1.msra.mxu0 %v1289
    %1413 = vmatprep.subr.mxu0 %v1294
    %1414 = vmatpush1.msra.mxu0 %v1293
    %1415 = vmatprep.subr.mxu0 %v1298
    %1416 = vmatpush1.msra.mxu0 %v1297
    %1417 = vmatprep.subr.mxu0 %v1302
    %1418 = vmatpush1.msra.mxu0 %v1301
    %1419 = vmatprep.subr.mxu0 %v1306
    %1420 = vmatpush1.msra.mxu0 %v1305
    %1421 = vmatprep.subr.mxu0 %v1310
    %1422 = vmatpush1.msra.mxu0 %v1309
    %1423 = vmatprep.subr.mxu0 %v1314
    %1424 = vmatpush1.msra.mxu0 %v1313
    %1425 = vmatprep.subr.mxu0 %v1318
    %1426 = vmatpush1.msra.mxu0 %v1317
    %1427 = vmatprep.subr.mxu0 %v1322
    %1428 = vmatpush1.msra.mxu0 %v1321
    %1429 = vmatprep.subr.mxu0 0.0
    %1430 = vmatpush1.msra.mxu0 0.0
    %1431 = vmatprep.subr.mxu0 0.0
    %1432 = vmatpush1.msra.mxu0 0.0
    %1433 = vmatprep.subr.mxu0 0.0
    %1434 = vmatpush1.msra.mxu0 0.0
    %1435 = vmatprep.subr.mxu0 0.0
    %1436 = vmatpush1.msra.mxu0 0.0
    %1437 = vmatprep.subr.mxu0 0.0
    %1438 = vmatpush1.msra.mxu0 0.0
    %1439 = vmatprep.subr.mxu0 0.0
    %1440 = vmatpush1.msra.mxu0 0.0
    %1441 = vmatprep.subr.mxu0 0.0
    %1442 = vmatpush1.msra.mxu0 0.0
    %1443 = vmatprep.subr.mxu0 0.0
    %1444 = vmatpush1.msra.mxu0 0.0
    %1445 = vmatprep.subr.mxu0 0.0
    %1446 = vmatpush1.msra.mxu0 0.0
    %1447 = vmatprep.subr.mxu0 0.0
    %1448 = vmatpush1.msra.mxu0 0.0
    %1449 = vmatprep.subr.mxu0 0.0
    %1450 = vmatpush1.msra.mxu0 0.0
    %1451 = vmatprep.subr.mxu0 0.0
    %1452 = vmatpush1.msra.mxu0 0.0
    %1453 = vmatprep.subr.mxu0 0.0
    %1454 = vmatpush1.msra.mxu0 0.0
    %1455 = vmatprep.subr.mxu0 0.0
    %1456 = vmatpush1.msra.mxu0 0.0
    %1457 = vmatprep.subr.mxu0 0.0
    %1458 = vmatpush1.msra.mxu0 0.0
    %1459 = vmatprep.subr.mxu0 0.0
    %1460 = vmatpush1.msra.mxu0 0.0
    %1461 = vmatprep.mubr.f32.mxu0 0.0
    %1462 = vmatmul.mubr.f32.gmra.mrb[0].mxu0 %v1324
    %v1463 = vpop.f32.mrb[0].mxu0
    %v1464 = vadd.f32 0.0, %v1463
    %v1465 = vpop.f32.mrb[0].mxu0
    %v1466 = vadd.f32 0.0, %v1465
    %1467 = vdwg.mxu0
    %v1468 = vadd.f32 %v187, %v1393
    %v1469 = vadd.f32 %v189, %v1395
    %v1470 = vadd.f32 %v264, %v1464
    %v1471 = vadd.f32 %v266, %v1466
    %v1472 = vxor.u32 %v1468, 2147483648
    %v1473 = vmul.f32 %v1472, 1.442695
    %v1474 = vpow.pop %v1473
    %v1475 = vadd.f32 %v1474, 1.0
    %v1476 = vrcp.pop %v1475
    %v1477 = vmul.f32 1.0, %v1476
    %v1478 = vxor.u32 %v1469, 2147483648
    %v1479 = vmul.f32 %v1478, 1.442695
    %v1480 = vpow.pop %v1479
    %v1481 = vadd.f32 %v1480, 1.0
    %v1482 = vrcp.pop %v1481
    %v1483 = vmul.f32 1.0, %v1482
    %v1484 = vtanh.pop %v1470
    %v1485 = vxor.u32 %v1471, 2147483648
    %v1486 = vmul.f32 %v1485, 1.442695
    %v1487 = vpow.pop %v1486
    %v1488 = vadd.f32 %v1487, 1.0
    %v1489 = vrcp.pop %v1488
    %v1490 = vmul.f32 1.0, %v1489
    %v1492 = vrot.slane %v1255, 6
    %v1494 = vmul.f32 %v1483, %v1492
    %v1495 = vmul.f32 %v1477, %v1484
    %v1496 = vadd.f32 %v1494, %v1495
    %v1497 = vtanh.pop %v1496
    %v1498 = vmul.f32 %v1490, %v1497
    %1499 = vst [vmem:[#allocation2 + $0x8] sm:$0x3] %v1498
    %v1500 = vld [vmem:[#allocation5] sm:$0xff]
    %v1501 = vld [vmem:[#allocation5 + $0x8] sm:$0xff]
    %v1502 = vld [vmem:[#allocation5 + $0x10] sm:$0xff]
    %v1503 = vld [vmem:[#allocation5 + $0x18] sm:$0xff]
    %v1504 = vld [vmem:[#allocation5 + $0x20] sm:$0xff]
    %v1505 = vld [vmem:[#allocation5 + $0x28] sm:$0xff]
    %v1506 = vld [vmem:[#allocation5 + $0x30] sm:$0xff]
    %v1507 = vld [vmem:[#allocation5 + $0x38] sm:$0xff]
    %v1508 = vld [vmem:[#allocation5 + $0x40] sm:$0xff]
    %v1509 = vld [vmem:[#allocation5 + $0x48] sm:$0xff]
    %v1510 = vld [vmem:[#allocation5 + $0x50] sm:$0xff]
    %v1511 = vld [vmem:[#allocation5 + $0x58] sm:$0xff]
    %v1512 = vld [vmem:[#allocation5 + $0x60] sm:$0xff]
    %v1513 = vld [vmem:[#allocation5 + $0x68] sm:$0xff]
    %v1514 = vld [vmem:[#allocation5 + $0x70] sm:$0xff]
    %v1515 = vld [vmem:[#allocation5 + $0x78] sm:$0xff]
    %v1516 = vld [vmem:[#allocation5 + $0x80] sm:$0xff]
    %v1517 = vld [vmem:[#allocation5 + $0x88] sm:$0xff]
    %v1518 = vld [vmem:[#allocation5 + $0x90] sm:$0xff]
    %v1519 = vld [vmem:[#allocation5 + $0x98] sm:$0xff]
    %v1520 = vld [vmem:[#allocation5 + $0xa0] sm:$0xff]
    %v1521 = vld [vmem:[#allocation5 + $0xa8] sm:$0xff]
    %v1522 = vld [vmem:[#allocation5 + $0xb0] sm:$0xff]
    %v1523 = vld [vmem:[#allocation5 + $0xb8] sm:$0xff]
    %v1524 = vld [vmem:[#allocation5 + $0xc0] sm:$0xff]
    %v1525 = vld [vmem:[#allocation5 + $0xc8] sm:$0xff]
    %v1526 = vld [vmem:[#allocation5 + $0xd0] sm:$0xff]
    %v1527 = vld [vmem:[#allocation5 + $0xd8] sm:$0xff]
    %v1528 = vld [vmem:[#allocation5 + $0xe0] sm:$0xff]
    %v1529 = vld [vmem:[#allocation5 + $0xe8] sm:$0xff]
    %v1530 = vld [vmem:[#allocation5 + $0xf0] sm:$0xff]
    %v1531 = vld [vmem:[#allocation5 + $0xf8] sm:$0xff]
    %v1532 = vld [vmem:[#allocation5 + $0x100] sm:$0xff]
    %v1533 = vld [vmem:[#allocation5 + $0x108] sm:$0xff]
    %v1534 = vld [vmem:[#allocation5 + $0x110] sm:$0xff]
    %v1535 = vld [vmem:[#allocation5 + $0x118] sm:$0xff]
    %v1536 = vld [vmem:[#allocation5 + $0x120] sm:$0xff]
    %v1537 = vld [vmem:[#allocation5 + $0x128] sm:$0xff]
    %v1538 = vld [vmem:[#allocation5 + $0x130] sm:$0xff]
    %v1539 = vld [vmem:[#allocation5 + $0x138] sm:$0xff]
    %v1540 = vld [vmem:[#allocation5 + $0x140] sm:$0xff]
    %v1541 = vld [vmem:[#allocation5 + $0x148] sm:$0xff]
    %v1542 = vld [vmem:[#allocation5 + $0x150] sm:$0xff]
    %v1543 = vld [vmem:[#allocation5 + $0x158] sm:$0xff]
    %v1544 = vld [vmem:[#allocation5 + $0x160] sm:$0xff]
    %v1545 = vld [vmem:[#allocation5 + $0x168] sm:$0xff]
    %v1546 = vld [vmem:[#allocation5 + $0x170] sm:$0xff]
    %v1547 = vld [vmem:[#allocation5 + $0x178] sm:$0xff]
    %v1548 = vld [vmem:[#allocation5 + $0x180] sm:$0xff]
    %v1549 = vld [vmem:[#allocation5 + $0x188] sm:$0xff]
    %v1550 = vld [vmem:[#allocation5 + $0x190] sm:$0xff]
    %v1551 = vld [vmem:[#allocation5 + $0x198] sm:$0xff]
    %v1552 = vld [vmem:[#allocation5 + $0x1a0] sm:$0xff]
    %v1553 = vld [vmem:[#allocation5 + $0x1a8] sm:$0xff]
    %v1554 = vld [vmem:[#allocation5 + $0x1b0] sm:$0xff]
    %v1555 = vld [vmem:[#allocation5 + $0x1b8] sm:$0xff]
    %v1556 = vld [vmem:[#allocation5 + $0x1c0] sm:$0xff]
    %v1557 = vld [vmem:[#allocation5 + $0x1c8] sm:$0xff]
    %v1558 = vld [vmem:[#allocation5 + $0x1d0] sm:$0xff]
    %v1559 = vld [vmem:[#allocation5 + $0x1d8] sm:$0xff]
    %v1560 = vld [vmem:[#allocation5 + $0x1e0] sm:$0xff]
    %v1561 = vld [vmem:[#allocation5 + $0x1e8] sm:$0xff]
    %v1562 = vld [vmem:[#allocation5 + $0x1f0] sm:$0xff]
    %v1563 = vld [vmem:[#allocation5 + $0x1f8] sm:$0xff]
    %1564 = vmatprep.subr.mxu0 %v1501
    %1565 = vmatpush1.msra.mxu0 %v1500
    %1566 = vmatprep.subr.mxu0 %v1505
    %1567 = vmatpush1.msra.mxu0 %v1504
    %1568 = vmatprep.subr.mxu0 %v1509
    %1569 = vmatpush1.msra.mxu0 %v1508
    %1570 = vmatprep.subr.mxu0 %v1513
    %1571 = vmatpush1.msra.mxu0 %v1512
    %1572 = vmatprep.subr.mxu0 %v1517
    %1573 = vmatpush1.msra.mxu0 %v1516
    %1574 = vmatprep.subr.mxu0 %v1521
    %1575 = vmatpush1.msra.mxu0 %v1520
    %1576 = vmatprep.subr.mxu0 %v1525
    %1577 = vmatpush1.msra.mxu0 %v1524
    %1578 = vmatprep.subr.mxu0 %v1529
    %1579 = vmatpush1.msra.mxu0 %v1528
    %1580 = vmatprep.subr.mxu0 %v1533
    %1581 = vmatpush1.msra.mxu0 %v1532
    %1582 = vmatprep.subr.mxu0 %v1537
    %1583 = vmatpush1.msra.mxu0 %v1536
    %1584 = vmatprep.subr.mxu0 %v1541
    %1585 = vmatpush1.msra.mxu0 %v1540
    %1586 = vmatprep.subr.mxu0 %v1545
    %1587 = vmatpush1.msra.mxu0 %v1544
    %1588 = vmatprep.subr.mxu0 %v1549
    %1589 = vmatpush1.msra.mxu0 %v1548
    %1590 = vmatprep.subr.mxu0 %v1553
    %1591 = vmatpush1.msra.mxu0 %v1552
    %1592 = vmatprep.subr.mxu0 %v1557
    %1593 = vmatpush1.msra.mxu0 %v1556
    %1594 = vmatprep.subr.mxu0 %v1561
    %1595 = vmatpush1.msra.mxu0 %v1560
    %1596 = vmatprep.subr.mxu0 0.0
    %1597 = vmatpush1.msra.mxu0 0.0
    %1598 = vmatprep.subr.mxu0 0.0
    %1599 = vmatpush1.msra.mxu0 0.0
    %1600 = vmatprep.subr.mxu0 0.0
    %1601 = vmatpush1.msra.mxu0 0.0
    %1602 = vmatprep.subr.mxu0 0.0
    %1603 = vmatpush1.msra.mxu0 0.0
    %1604 = vmatprep.subr.mxu0 0.0
    %1605 = vmatpush1.msra.mxu0 0.0
    %1606 = vmatprep.subr.mxu0 0.0
    %1607 = vmatpush1.msra.mxu0 0.0
    %1608 = vmatprep.subr.mxu0 0.0
    %1609 = vmatpush1.msra.mxu0 0.0
    %1610 = vmatprep.subr.mxu0 0.0
    %1611 = vmatpush1.msra.mxu0 0.0
    %1612 = vmatprep.subr.mxu0 0.0
    %1613 = vmatpush1.msra.mxu0 0.0
    %1614 = vmatprep.subr.mxu0 0.0
    %1615 = vmatpush1.msra.mxu0 0.0
    %1616 = vmatprep.subr.mxu0 0.0
    %1617 = vmatpush1.msra.mxu0 0.0
    %1618 = vmatprep.subr.mxu0 0.0
    %1619 = vmatpush1.msra.mxu0 0.0
    %1620 = vmatprep.subr.mxu0 0.0
    %1621 = vmatpush1.msra.mxu0 0.0
    %1622 = vmatprep.subr.mxu0 0.0
    %1623 = vmatpush1.msra.mxu0 0.0
    %1624 = vmatprep.subr.mxu0 0.0
    %1625 = vmatpush1.msra.mxu0 0.0
    %1626 = vmatprep.subr.mxu0 0.0
    %1627 = vmatpush1.msra.mxu0 0.0
    %1628 = vmatprep.mubr.f32.mxu0 0.0
    %1629 = vmatmul.mubr.f32.gmra.mrb[0].mxu0 %v1498
    %v1630 = vpop.f32.mrb[0].mxu0
    %v1631 = vadd.f32 0.0, %v1630
    %v1632 = vpop.f32.mrb[0].mxu0
    %v1633 = vadd.f32 0.0, %v1632
    %1634 = vdwg.mxu0
    %1635 = vmatprep.subr.mxu0 %v1503
    %1636 = vmatpush1.msra.mxu0 %v1502
    %1637 = vmatprep.subr.mxu0 %v1507
    %1638 = vmatpush1.msra.mxu0 %v1506
    %1639 = vmatprep.subr.mxu0 %v1511
    %1640 = vmatpush1.msra.mxu0 %v1510
    %1641 = vmatprep.subr.mxu0 %v1515
    %1642 = vmatpush1.msra.mxu0 %v1514
    %1643 = vmatprep.subr.mxu0 %v1519
    %1644 = vmatpush1.msra.mxu0 %v1518
    %1645 = vmatprep.subr.mxu0 %v1523
    %1646 = vmatpush1.msra.mxu0 %v1522
    %1647 = vmatprep.subr.mxu0 %v1527
    %1648 = vmatpush1.msra.mxu0 %v1526
    %1649 = vmatprep.subr.mxu0 %v1531
    %1650 = vmatpush1.msra.mxu0 %v1530
    %1651 = vmatprep.subr.mxu0 %v1535
    %1652 = vmatpush1.msra.mxu0 %v1534
    %1653 = vmatprep.subr.mxu0 %v1539
    %1654 = vmatpush1.msra.mxu0 %v1538
    %1655 = vmatprep.subr.mxu0 %v1543
    %1656 = vmatpush1.msra.mxu0 %v1542
    %1657 = vmatprep.subr.mxu0 %v1547
    %1658 = vmatpush1.msra.mxu0 %v1546
    %1659 = vmatprep.subr.mxu0 %v1551
    %1660 = vmatpush1.msra.mxu0 %v1550
    %1661 = vmatprep.subr.mxu0 %v1555
    %1662 = vmatpush1.msra.mxu0 %v1554
    %1663 = vmatprep.subr.mxu0 %v1559
    %1664 = vmatpush1.msra.mxu0 %v1558
    %1665 = vmatprep.subr.mxu0 %v1563
    %1666 = vmatpush1.msra.mxu0 %v1562
    %1667 = vmatprep.subr.mxu0 0.0
    %1668 = vmatpush1.msra.mxu0 0.0
    %1669 = vmatprep.subr.mxu0 0.0
    %1670 = vmatpush1.msra.mxu0 0.0
    %1671 = vmatprep.subr.mxu0 0.0
    %1672 = vmatpush1.msra.mxu0 0.0
    %1673 = vmatprep.subr.mxu0 0.0
    %1674 = vmatpush1.msra.mxu0 0.0
    %1675 = vmatprep.subr.mxu0 0.0
    %1676 = vmatpush1.msra.mxu0 0.0
    %1677 = vmatprep.subr.mxu0 0.0
    %1678 = vmatpush1.msra.mxu0 0.0
    %1679 = vmatprep.subr.mxu0 0.0
    %1680 = vmatpush1.msra.mxu0 0.0
    %1681 = vmatprep.subr.mxu0 0.0
    %1682 = vmatpush1.msra.mxu0 0.0
    %1683 = vmatprep.subr.mxu0 0.0
    %1684 = vmatpush1.msra.mxu0 0.0
    %1685 = vmatprep.subr.mxu0 0.0
    %1686 = vmatpush1.msra.mxu0 0.0
    %1687 = vmatprep.subr.mxu0 0.0
    %1688 = vmatpush1.msra.mxu0 0.0
    %1689 = vmatprep.subr.mxu0 0.0
    %1690 = vmatpush1.msra.mxu0 0.0
    %1691 = vmatprep.subr.mxu0 0.0
    %1692 = vmatpush1.msra.mxu0 0.0
    %1693 = vmatprep.subr.mxu0 0.0
    %1694 = vmatpush1.msra.mxu0 0.0
    %1695 = vmatprep.subr.mxu0 0.0
    %1696 = vmatpush1.msra.mxu0 0.0
    %1697 = vmatprep.subr.mxu0 0.0
    %1698 = vmatpush1.msra.mxu0 0.0
    %1699 = vmatprep.mubr.f32.mxu0 0.0
    %1700 = vmatmul.mubr.f32.gmra.mrb[0].mxu0 %v1498
    %v1701 = vpop.f32.mrb[0].mxu0
    %v1702 = vadd.f32 0.0, %v1701
    %v1703 = vpop.f32.mrb[0].mxu0
    %v1704 = vadd.f32 0.0, %v1703
    %1705 = vdwg.mxu0
    %v1710 = vrot.slane %v1631, 6
    %v1711 = vrot.slane %v1633, 6
    %v1712 = vrot.slane %v1702, 6
    %v1713 = vrot.slane %v1704, 6
    %v1718 = vadd.f32 %v187, %v1710
    %v1719 = vadd.f32 %v189, %v1711
    %v1720 = vadd.f32 %v264, %v1712
    %v1721 = vadd.f32 %v266, %v1713
    %v1722 = vxor.u32 %v1718, 2147483648
    %v1723 = vmul.f32 %v1722, 1.442695
    %v1724 = vpow.pop %v1723
    %v1725 = vadd.f32 %v1724, 1.0
    %v1726 = vrcp.pop %v1725
    %v1727 = vmul.f32 1.0, %v1726
    %v1728 = vxor.u32 %v1719, 2147483648
    %v1729 = vmul.f32 %v1728, 1.442695
    %v1730 = vpow.pop %v1729
    %v1731 = vadd.f32 %v1730, 1.0
    %v1732 = vrcp.pop %v1731
    %v1733 = vmul.f32 1.0, %v1732
    %v1734 = vtanh.pop %v1720
    %v1735 = vxor.u32 %v1721, 2147483648
    %v1736 = vmul.f32 %v1735, 1.442695
    %v1737 = vpow.pop %v1736
    %v1738 = vadd.f32 %v1737, 1.0
    %v1739 = vrcp.pop %v1738
    %v1740 = vmul.f32 1.0, %v1739
    %v1742 = vrot.slane %v1496, 6
    %v1744 = vmul.f32 %v1733, %v1742
    %v1745 = vmul.f32 %v1727, %v1734
    %v1746 = vadd.f32 %v1744, %v1745
    %v1747 = vtanh.pop %v1746
    %v1748 = vmul.f32 %v1740, %v1747
    %1749 = vst [vmem:[#allocation2 + $0x8] sm:$0xc] %v1748
    %v1750 = vld [vmem:[#allocation5] sm:$0xff]
    %v1751 = vld [vmem:[#allocation5 + $0x8] sm:$0xff]
    %v1752 = vld [vmem:[#allocation5 + $0x10] sm:$0xff]
    %v1753 = vld [vmem:[#allocation5 + $0x18] sm:$0xff]
    %v1754 = vld [vmem:[#allocation5 + $0x20] sm:$0xff]
    %v1755 = vld [vmem:[#allocation5 + $0x28] sm:$0xff]
    %v1756 = vld [vmem:[#allocation5 + $0x30] sm:$0xff]
    %v1757 = vld [vmem:[#allocation5 + $0x38] sm:$0xff]
    %v1758 = vld [vmem:[#allocation5 + $0x40] sm:$0xff]
    %v1759 = vld [vmem:[#allocation5 + $0x48] sm:$0xff]
    %v1760 = vld [vmem:[#allocation5 + $0x50] sm:$0xff]
    %v1761 = vld [vmem:[#allocation5 + $0x58] sm:$0xff]
    %v1762 = vld [vmem:[#allocation5 + $0x60] sm:$0xff]
    %v1763 = vld [vmem:[#allocation5 + $0x68] sm:$0xff]
    %v1764 = vld [vmem:[#allocation5 + $0x70] sm:$0xff]
    %v1765 = vld [vmem:[#allocation5 + $0x78] sm:$0xff]
    %v1766 = vld [vmem:[#allocation5 + $0x80] sm:$0xff]
    %v1767 = vld [vmem:[#allocation5 + $0x88] sm:$0xff]
    %v1768 = vld [vmem:[#allocation5 + $0x90] sm:$0xff]
    %v1769 = vld [vmem:[#allocation5 + $0x98] sm:$0xff]
    %v1770 = vld [vmem:[#allocation5 + $0xa0] sm:$0xff]
    %v1771 = vld [vmem:[#allocation5 + $0xa8] sm:$0xff]
    %v1772 = vld [vmem:[#allocation5 + $0xb0] sm:$0xff]
    %v1773 = vld [vmem:[#allocation5 + $0xb8] sm:$0xff]
    %v1774 = vld [vmem:[#allocation5 + $0xc0] sm:$0xff]
    %v1775 = vld [vmem:[#allocation5 + $0xc8] sm:$0xff]
    %v1776 = vld [vmem:[#allocation5 + $0xd0] sm:$0xff]
    %v1777 = vld [vmem:[#allocation5 + $0xd8] sm:$0xff]
    %v1778 = vld [vmem:[#allocation5 + $0xe0] sm:$0xff]
    %v1779 = vld [vmem:[#allocation5 + $0xe8] sm:$0xff]
    %v1780 = vld [vmem:[#allocation5 + $0xf0] sm:$0xff]
    %v1781 = vld [vmem:[#allocation5 + $0xf8] sm:$0xff]
    %v1782 = vld [vmem:[#allocation5 + $0x100] sm:$0xff]
    %v1783 = vld [vmem:[#allocation5 + $0x108] sm:$0xff]
    %v1784 = vld [vmem:[#allocation5 + $0x110] sm:$0xff]
    %v1785 = vld [vmem:[#allocation5 + $0x118] sm:$0xff]
    %v1786 = vld [vmem:[#allocation5 + $0x120] sm:$0xff]
    %v1787 = vld [vmem:[#allocation5 + $0x128] sm:$0xff]
    %v1788 = vld [vmem:[#allocation5 + $0x130] sm:$0xff]
    %v1789 = vld [vmem:[#allocation5 + $0x138] sm:$0xff]
    %v1790 = vld [vmem:[#allocation5 + $0x140] sm:$0xff]
    %v1791 = vld [vmem:[#allocation5 + $0x148] sm:$0xff]
    %v1792 = vld [vmem:[#allocation5 + $0x150] sm:$0xff]
    %v1793 = vld [vmem:[#allocation5 + $0x158] sm:$0xff]
    %v1794 = vld [vmem:[#allocation5 + $0x160] sm:$0xff]
    %v1795 = vld [vmem:[#allocation5 + $0x168] sm:$0xff]
    %v1796 = vld [vmem:[#allocation5 + $0x170] sm:$0xff]
    %v1797 = vld [vmem:[#allocation5 + $0x178] sm:$0xff]
    %v1798 = vld [vmem:[#allocation5 + $0x180] sm:$0xff]
    %v1799 = vld [vmem:[#allocation5 + $0x188] sm:$0xff]
    %v1800 = vld [vmem:[#allocation5 + $0x190] sm:$0xff]
    %v1801 = vld [vmem:[#allocation5 + $0x198] sm:$0xff]
    %v1802 = vld [vmem:[#allocation5 + $0x1a0] sm:$0xff]
    %v1803 = vld [vmem:[#allocation5 + $0x1a8] sm:$0xff]
    %v1804 = vld [vmem:[#allocation5 + $0x1b0] sm:$0xff]
    %v1805 = vld [vmem:[#allocation5 + $0x1b8] sm:$0xff]
    %v1806 = vld [vmem:[#allocation5 + $0x1c0] sm:$0xff]
    %v1807 = vld [vmem:[#allocation5 + $0x1c8] sm:$0xff]
    %v1808 = vld [vmem:[#allocation5 + $0x1d0] sm:$0xff]
    %v1809 = vld [vmem:[#allocation5 + $0x1d8] sm:$0xff]
    %v1810 = vld [vmem:[#allocation5 + $0x1e0] sm:$0xff]
    %v1811 = vld [vmem:[#allocation5 + $0x1e8] sm:$0xff]
    %v1812 = vld [vmem:[#allocation5 + $0x1f0] sm:$0xff]
    %v1813 = vld [vmem:[#allocation5 + $0x1f8] sm:$0xff]
    %v1815 = vrot.slane %v1748, 2
    %1817 = vmatprep.subr.mxu0 %v1751
    %1818 = vmatpush1.msra.mxu0 %v1750
    %1819 = vmatprep.subr.mxu0 %v1755
    %1820 = vmatpush1.msra.mxu0 %v1754
    %1821 = vmatprep.subr.mxu0 %v1759
    %1822 = vmatpush1.msra.mxu0 %v1758
    %1823 = vmatprep.subr.mxu0 %v1763
    %1824 = vmatpush1.msra.mxu0 %v1762
    %1825 = vmatprep.subr.mxu0 %v1767
    %1826 = vmatpush1.msra.mxu0 %v1766
    %1827 = vmatprep.subr.mxu0 %v1771
    %1828 = vmatpush1.msra.mxu0 %v1770
    %1829 = vmatprep.subr.mxu0 %v1775
    %1830 = vmatpush1.msra.mxu0 %v1774
    %1831 = vmatprep.subr.mxu0 %v1779
    %1832 = vmatpush1.msra.mxu0 %v1778
    %1833 = vmatprep.subr.mxu0 %v1783
    %1834 = vmatpush1.msra.mxu0 %v1782
    %1835 = vmatprep.subr.mxu0 %v1787
    %1836 = vmatpush1.msra.mxu0 %v1786
    %1837 = vmatprep.subr.mxu0 %v1791
    %1838 = vmatpush1.msra.mxu0 %v1790
    %1839 = vmatprep.subr.mxu0 %v1795
    %1840 = vmatpush1.msra.mxu0 %v1794
    %1841 = vmatprep.subr.mxu0 %v1799
    %1842 = vmatpush1.msra.mxu0 %v1798
    %1843 = vmatprep.subr.mxu0 %v1803
    %1844 = vmatpush1.msra.mxu0 %v1802
    %1845 = vmatprep.subr.mxu0 %v1807
    %1846 = vmatpush1.msra.mxu0 %v1806
    %1847 = vmatprep.subr.mxu0 %v1811
    %1848 = vmatpush1.msra.mxu0 %v1810
    %1849 = vmatprep.subr.mxu0 0.0
    %1850 = vmatpush1.msra.mxu0 0.0
    %1851 = vmatprep.subr.mxu0 0.0
    %1852 = vmatpush1.msra.mxu0 0.0
    %1853 = vmatprep.subr.mxu0 0.0
    %1854 = vmatpush1.msra.mxu0 0.0
    %1855 = vmatprep.subr.mxu0 0.0
    %1856 = vmatpush1.msra.mxu0 0.0
    %1857 = vmatprep.subr.mxu0 0.0
    %1858 = vmatpush1.msra.mxu0 0.0
    %1859 = vmatprep.subr.mxu0 0.0
    %1860 = vmatpush1.msra.mxu0 0.0
    %1861 = vmatprep.subr.mxu0 0.0
    %1862 = vmatpush1.msra.mxu0 0.0
    %1863 = vmatprep.subr.mxu0 0.0
    %1864 = vmatpush1.msra.mxu0 0.0
    %1865 = vmatprep.subr.mxu0 0.0
    %1866 = vmatpush1.msra.mxu0 0.0
    %1867 = vmatprep.subr.mxu0 0.0
    %1868 = vmatpush1.msra.mxu0 0.0
    %1869 = vmatprep.subr.mxu0 0.0
    %1870 = vmatpush1.msra.mxu0 0.0
    %1871 = vmatprep.subr.mxu0 0.0
    %1872 = vmatpush1.msra.mxu0 0.0
    %1873 = vmatprep.subr.mxu0 0.0
    %1874 = vmatpush1.msra.mxu0 0.0
    %1875 = vmatprep.subr.mxu0 0.0
    %1876 = vmatpush1.msra.mxu0 0.0
    %1877 = vmatprep.subr.mxu0 0.0
    %1878 = vmatpush1.msra.mxu0 0.0
    %1879 = vmatprep.subr.mxu0 0.0
    %1880 = vmatpush1.msra.mxu0 0.0
    %1881 = vmatprep.mubr.f32.mxu0 0.0
    %1882 = vmatmul.mubr.f32.gmra.mrb[0].mxu0 %v1815
    %v1883 = vpop.f32.mrb[0].mxu0
    %v1884 = vadd.f32 0.0, %v1883
    %v1885 = vpop.f32.mrb[0].mxu0
    %v1886 = vadd.f32 0.0, %v1885
    %1887 = vdwg.mxu0
    %1888 = vmatprep.subr.mxu0 %v1753
    %1889 = vmatpush1.msra.mxu0 %v1752
    %1890 = vmatprep.subr.mxu0 %v1757
    %1891 = vmatpush1.msra.mxu0 %v1756
    %1892 = vmatprep.subr.mxu0 %v1761
    %1893 = vmatpush1.msra.mxu0 %v1760
    %1894 = vmatprep.subr.mxu0 %v1765
    %1895 = vmatpush1.msra.mxu0 %v1764
    %1896 = vmatprep.subr.mxu0 %v1769
    %1897 = vmatpush1.msra.mxu0 %v1768
    %1898 = vmatprep.subr.mxu0 %v1773
    %1899 = vmatpush1.msra.mxu0 %v1772
    %1900 = vmatprep.subr.mxu0 %v1777
    %1901 = vmatpush1.msra.mxu0 %v1776
    %1902 = vmatprep.subr.mxu0 %v1781
    %1903 = vmatpush1.msra.mxu0 %v1780
    %1904 = vmatprep.subr.mxu0 %v1785
    %1905 = vmatpush1.msra.mxu0 %v1784
    %1906 = vmatprep.subr.mxu0 %v1789
    %1907 = vmatpush1.msra.mxu0 %v1788
    %1908 = vmatprep.subr.mxu0 %v1793
    %1909 = vmatpush1.msra.mxu0 %v1792
    %1910 = vmatprep.subr.mxu0 %v1797
    %1911 = vmatpush1.msra.mxu0 %v1796
    %1912 = vmatprep.subr.mxu0 %v1801
    %1913 = vmatpush1.msra.mxu0 %v1800
    %1914 = vmatprep.subr.mxu0 %v1805
    %1915 = vmatpush1.msra.mxu0 %v1804
    %1916 = vmatprep.subr.mxu0 %v1809
    %1917 = vmatpush1.msra.mxu0 %v1808
    %1918 = vmatprep.subr.mxu0 %v1813
    %1919 = vmatpush1.msra.mxu0 %v1812
    %1920 = vmatprep.subr.mxu0 0.0
    %1921 = vmatpush1.msra.mxu0 0.0
    %1922 = vmatprep.subr.mxu0 0.0
    %1923 = vmatpush1.msra.mxu0 0.0
    %1924 = vmatprep.subr.mxu0 0.0
    %1925 = vmatpush1.msra.mxu0 0.0
    %1926 = vmatprep.subr.mxu0 0.0
    %1927 = vmatpush1.msra.mxu0 0.0
    %1928 = vmatprep.subr.mxu0 0.0
    %1929 = vmatpush1.msra.mxu0 0.0
    %1930 = vmatprep.subr.mxu0 0.0
    %1931 = vmatpush1.msra.mxu0 0.0
    %1932 = vmatprep.subr.mxu0 0.0
    %1933 = vmatpush1.msra.mxu0 0.0
    %1934 = vmatprep.subr.mxu0 0.0
    %1935 = vmatpush1.msra.mxu0 0.0
    %1936 = vmatprep.subr.mxu0 0.0
    %1937 = vmatpush1.msra.mxu0 0.0
    %1938 = vmatprep.subr.mxu0 0.0
    %1939 = vmatpush1.msra.mxu0 0.0
    %1940 = vmatprep.subr.mxu0 0.0
    %1941 = vmatpush1.msra.mxu0 0.0
    %1942 = vmatprep.subr.mxu0 0.0
    %1943 = vmatpush1.msra.mxu0 0.0
    %1944 = vmatprep.subr.mxu0 0.0
    %1945 = vmatpush1.msra.mxu0 0.0
    %1946 = vmatprep.subr.mxu0 0.0
    %1947 = vmatpush1.msra.mxu0 0.0
    %1948 = vmatprep.subr.mxu0 0.0
    %1949 = vmatpush1.msra.mxu0 0.0
    %1950 = vmatprep.subr.mxu0 0.0
    %1951 = vmatpush1.msra.mxu0 0.0
    %1952 = vmatprep.mubr.f32.mxu0 0.0
    %1953 = vmatmul.mubr.f32.gmra.mrb[0].mxu0 %v1815
    %v1954 = vpop.f32.mrb[0].mxu0
    %v1955 = vadd.f32 0.0, %v1954
    %v1956 = vpop.f32.mrb[0].mxu0
    %v1957 = vadd.f32 0.0, %v1956
    %1958 = vdwg.mxu0
    %v1963 = vrot.slane %v1884, 4
    %v1964 = vrot.slane %v1886, 4
    %v1965 = vrot.slane %v1955, 4
    %v1966 = vrot.slane %v1957, 4
    %v1971 = vadd.f32 %v187, %v1963
    %v1972 = vadd.f32 %v189, %v1964
    %v1973 = vadd.f32 %v264, %v1965
    %v1974 = vadd.f32 %v266, %v1966
    %v1975 = vxor.u32 %v1971, 2147483648
    %v1976 = vmul.f32 %v1975, 1.442695
    %v1977 = vpow.pop %v1976
    %v1978 = vadd.f32 %v1977, 1.0
    %v1979 = vrcp.pop %v1978
    %v1980 = vmul.f32 1.0, %v1979
    %v1981 = vxor.u32 %v1972, 2147483648
    %v1982 = vmul.f32 %v1981, 1.442695
    %v1983 = vpow.pop %v1982
    %v1984 = vadd.f32 %v1983, 1.0
    %v1985 = vrcp.pop %v1984
    %v1986 = vmul.f32 1.0, %v1985
    %v1987 = vtanh.pop %v1973
    %v1988 = vxor.u32 %v1974, 2147483648
    %v1989 = vmul.f32 %v1988, 1.442695
    %v1990 = vpow.pop %v1989
    %v1991 = vadd.f32 %v1990, 1.0
    %v1992 = vrcp.pop %v1991
    %v1993 = vmul.f32 1.0, %v1992
    %v1995 = vrot.slane %v1746, 6
    %v1997 = vmul.f32 %v1986, %v1995
    %v1998 = vmul.f32 %v1980, %v1987
    %v1999 = vadd.f32 %v1997, %v1998
    %v2000 = vtanh.pop %v1999
    %v2001 = vmul.f32 %v1993, %v2000
    %2002 = vst [vmem:[#allocation2 + $0x8] sm:$0x30] %v2001
    %v2003 = vld [vmem:[#allocation5] sm:$0xff]
    %v2004 = vld [vmem:[#allocation5 + $0x8] sm:$0xff]
    %v2005 = vld [vmem:[#allocation5 + $0x10] sm:$0xff]
    %v2006 = vld [vmem:[#allocation5 + $0x18] sm:$0xff]
    %v2007 = vld [vmem:[#allocation5 + $0x20] sm:$0xff]
    %v2008 = vld [vmem:[#allocation5 + $0x28] sm:$0xff]
    %v2009 = vld [vmem:[#allocation5 + $0x30] sm:$0xff]
    %v2010 = vld [vmem:[#allocation5 + $0x38] sm:$0xff]
    %v2011 = vld [vmem:[#allocation5 + $0x40] sm:$0xff]
    %v2012 = vld [vmem:[#allocation5 + $0x48] sm:$0xff]
    %v2013 = vld [vmem:[#allocation5 + $0x50] sm:$0xff]
    %v2014 = vld [vmem:[#allocation5 + $0x58] sm:$0xff]
    %v2015 = vld [vmem:[#allocation5 + $0x60] sm:$0xff]
    %v2016 = vld [vmem:[#allocation5 + $0x68] sm:$0xff]
    %v2017 = vld [vmem:[#allocation5 + $0x70] sm:$0xff]
    %v2018 = vld [vmem:[#allocation5 + $0x78] sm:$0xff]
    %v2019 = vld [vmem:[#allocation5 + $0x80] sm:$0xff]
    %v2020 = vld [vmem:[#allocation5 + $0x88] sm:$0xff]
    %v2021 = vld [vmem:[#allocation5 + $0x90] sm:$0xff]
    %v2022 = vld [vmem:[#allocation5 + $0x98] sm:$0xff]
    %v2023 = vld [vmem:[#allocation5 + $0xa0] sm:$0xff]
    %v2024 = vld [vmem:[#allocation5 + $0xa8] sm:$0xff]
    %v2025 = vld [vmem:[#allocation5 + $0xb0] sm:$0xff]
    %v2026 = vld [vmem:[#allocation5 + $0xb8] sm:$0xff]
    %v2027 = vld [vmem:[#allocation5 + $0xc0] sm:$0xff]
    %v2028 = vld [vmem:[#allocation5 + $0xc8] sm:$0xff]
    %v2029 = vld [vmem:[#allocation5 + $0xd0] sm:$0xff]
    %v2030 = vld [vmem:[#allocation5 + $0xd8] sm:$0xff]
    %v2031 = vld [vmem:[#allocation5 + $0xe0] sm:$0xff]
    %v2032 = vld [vmem:[#allocation5 + $0xe8] sm:$0xff]
    %v2033 = vld [vmem:[#allocation5 + $0xf0] sm:$0xff]
    %v2034 = vld [vmem:[#allocation5 + $0xf8] sm:$0xff]
    %v2035 = vld [vmem:[#allocation5 + $0x100] sm:$0xff]
    %v2036 = vld [vmem:[#allocation5 + $0x108] sm:$0xff]
    %v2037 = vld [vmem:[#allocation5 + $0x110] sm:$0xff]
    %v2038 = vld [vmem:[#allocation5 + $0x118] sm:$0xff]
    %v2039 = vld [vmem:[#allocation5 + $0x120] sm:$0xff]
    %v2040 = vld [vmem:[#allocation5 + $0x128] sm:$0xff]
    %v2041 = vld [vmem:[#allocation5 + $0x130] sm:$0xff]
    %v2042 = vld [vmem:[#allocation5 + $0x138] sm:$0xff]
    %v2043 = vld [vmem:[#allocation5 + $0x140] sm:$0xff]
    %v2044 = vld [vmem:[#allocation5 + $0x148] sm:$0xff]
    %v2045 = vld [vmem:[#allocation5 + $0x150] sm:$0xff]
    %v2046 = vld [vmem:[#allocation5 + $0x158] sm:$0xff]
    %v2047 = vld [vmem:[#allocation5 + $0x160] sm:$0xff]
    %v2048 = vld [vmem:[#allocation5 + $0x168] sm:$0xff]
    %v2049 = vld [vmem:[#allocation5 + $0x170] sm:$0xff]
    %v2050 = vld [vmem:[#allocation5 + $0x178] sm:$0xff]
    %v2051 = vld [vmem:[#allocation5 + $0x180] sm:$0xff]
    %v2052 = vld [vmem:[#allocation5 + $0x188] sm:$0xff]
    %v2053 = vld [vmem:[#allocation5 + $0x190] sm:$0xff]
    %v2054 = vld [vmem:[#allocation5 + $0x198] sm:$0xff]
    %v2055 = vld [vmem:[#allocation5 + $0x1a0] sm:$0xff]
    %v2056 = vld [vmem:[#allocation5 + $0x1a8] sm:$0xff]
    %v2057 = vld [vmem:[#allocation5 + $0x1b0] sm:$0xff]
    %v2058 = vld [vmem:[#allocation5 + $0x1b8] sm:$0xff]
    %v2059 = vld [vmem:[#allocation5 + $0x1c0] sm:$0xff]
    %v2060 = vld [vmem:[#allocation5 + $0x1c8] sm:$0xff]
    %v2061 = vld [vmem:[#allocation5 + $0x1d0] sm:$0xff]
    %v2062 = vld [vmem:[#allocation5 + $0x1d8] sm:$0xff]
    %v2063 = vld [vmem:[#allocation5 + $0x1e0] sm:$0xff]
    %v2064 = vld [vmem:[#allocation5 + $0x1e8] sm:$0xff]
    %v2065 = vld [vmem:[#allocation5 + $0x1f0] sm:$0xff]
    %v2066 = vld [vmem:[#allocation5 + $0x1f8] sm:$0xff]
    %v2068 = vrot.slane %v2001, 4
    %2070 = vmatprep.subr.mxu0 %v2004
    %2071 = vmatpush1.msra.mxu0 %v2003
    %2072 = vmatprep.subr.mxu0 %v2008
    %2073 = vmatpush1.msra.mxu0 %v2007
    %2074 = vmatprep.subr.mxu0 %v2012
    %2075 = vmatpush1.msra.mxu0 %v2011
    %2076 = vmatprep.subr.mxu0 %v2016
    %2077 = vmatpush1.msra.mxu0 %v2015
    %2078 = vmatprep.subr.mxu0 %v2020
    %2079 = vmatpush1.msra.mxu0 %v2019
    %2080 = vmatprep.subr.mxu0 %v2024
    %2081 = vmatpush1.msra.mxu0 %v2023
    %2082 = vmatprep.subr.mxu0 %v2028
    %2083 = vmatpush1.msra.mxu0 %v2027
    %2084 = vmatprep.subr.mxu0 %v2032
    %2085 = vmatpush1.msra.mxu0 %v2031
    %2086 = vmatprep.subr.mxu0 %v2036
    %2087 = vmatpush1.msra.mxu0 %v2035
    %2088 = vmatprep.subr.mxu0 %v2040
    %2089 = vmatpush1.msra.mxu0 %v2039
    %2090 = vmatprep.subr.mxu0 %v2044
    %2091 = vmatpush1.msra.mxu0 %v2043
    %2092 = vmatprep.subr.mxu0 %v2048
    %2093 = vmatpush1.msra.mxu0 %v2047
    %2094 = vmatprep.subr.mxu0 %v2052
    %2095 = vmatpush1.msra.mxu0 %v2051
    %2096 = vmatprep.subr.mxu0 %v2056
    %2097 = vmatpush1.msra.mxu0 %v2055
    %2098 = vmatprep.subr.mxu0 %v2060
    %2099 = vmatpush1.msra.mxu0 %v2059
    %2100 = vmatprep.subr.mxu0 %v2064
    %2101 = vmatpush1.msra.mxu0 %v2063
    %2102 = vmatprep.subr.mxu0 0.0
    %2103 = vmatpush1.msra.mxu0 0.0
    %2104 = vmatprep.subr.mxu0 0.0
    %2105 = vmatpush1.msra.mxu0 0.0
    %2106 = vmatprep.subr.mxu0 0.0
    %2107 = vmatpush1.msra.mxu0 0.0
    %2108 = vmatprep.subr.mxu0 0.0
    %2109 = vmatpush1.msra.mxu0 0.0
    %2110 = vmatprep.subr.mxu0 0.0
    %2111 = vmatpush1.msra.mxu0 0.0
    %2112 = vmatprep.subr.mxu0 0.0
    %2113 = vmatpush1.msra.mxu0 0.0
    %2114 = vmatprep.subr.mxu0 0.0
    %2115 = vmatpush1.msra.mxu0 0.0
    %2116 = vmatprep.subr.mxu0 0.0
    %2117 = vmatpush1.msra.mxu0 0.0
    %2118 = vmatprep.subr.mxu0 0.0
    %2119 = vmatpush1.msra.mxu0 0.0
    %2120 = vmatprep.subr.mxu0 0.0
    %2121 = vmatpush1.msra.mxu0 0.0
    %2122 = vmatprep.subr.mxu0 0.0
    %2123 = vmatpush1.msra.mxu0 0.0
    %2124 = vmatprep.subr.mxu0 0.0
    %2125 = vmatpush1.msra.mxu0 0.0
    %2126 = vmatprep.subr.mxu0 0.0
    %2127 = vmatpush1.msra.mxu0 0.0
    %2128 = vmatprep.subr.mxu0 0.0
    %2129 = vmatpush1.msra.mxu0 0.0
    %2130 = vmatprep.subr.mxu0 0.0
    %2131 = vmatpush1.msra.mxu0 0.0
    %2132 = vmatprep.subr.mxu0 0.0
    %2133 = vmatpush1.msra.mxu0 0.0
    %2134 = vmatprep.mubr.f32.mxu0 0.0
    %2135 = vmatmul.mubr.f32.gmra.mrb[0].mxu0 %v2068
    %v2136 = vpop.f32.mrb[0].mxu0
    %v2137 = vadd.f32 0.0, %v2136
    %v2138 = vpop.f32.mrb[0].mxu0
    %v2139 = vadd.f32 0.0, %v2138
    %2140 = vdwg.mxu0
    %2141 = vmatprep.subr.mxu0 %v2006
    %2142 = vmatpush1.msra.mxu0 %v2005
    %2143 = vmatprep.subr.mxu0 %v2010
    %2144 = vmatpush1.msra.mxu0 %v2009
    %2145 = vmatprep.subr.mxu0 %v2014
    %2146 = vmatpush1.msra.mxu0 %v2013
    %2147 = vmatprep.subr.mxu0 %v2018
    %2148 = vmatpush1.msra.mxu0 %v2017
    %2149 = vmatprep.subr.mxu0 %v2022
    %2150 = vmatpush1.msra.mxu0 %v2021
    %2151 = vmatprep.subr.mxu0 %v2026
    %2152 = vmatpush1.msra.mxu0 %v2025
    %2153 = vmatprep.subr.mxu0 %v2030
    %2154 = vmatpush1.msra.mxu0 %v2029
    %2155 = vmatprep.subr.mxu0 %v2034
    %2156 = vmatpush1.msra.mxu0 %v2033
    %2157 = vmatprep.subr.mxu0 %v2038
    %2158 = vmatpush1.msra.mxu0 %v2037
    %2159 = vmatprep.subr.mxu0 %v2042
    %2160 = vmatpush1.msra.mxu0 %v2041
    %2161 = vmatprep.subr.mxu0 %v2046
    %2162 = vmatpush1.msra.mxu0 %v2045
    %2163 = vmatprep.subr.mxu0 %v2050
    %2164 = vmatpush1.msra.mxu0 %v2049
    %2165 = vmatprep.subr.mxu0 %v2054
    %2166 = vmatpush1.msra.mxu0 %v2053
    %2167 = vmatprep.subr.mxu0 %v2058
    %2168 = vmatpush1.msra.mxu0 %v2057
    %2169 = vmatprep.subr.mxu0 %v2062
    %2170 = vmatpush1.msra.mxu0 %v2061
    %2171 = vmatprep.subr.mxu0 %v2066
    %2172 = vmatpush1.msra.mxu0 %v2065
    %2173 = vmatprep.subr.mxu0 0.0
    %2174 = vmatpush1.msra.mxu0 0.0
    %2175 = vmatprep.subr.mxu0 0.0
    %2176 = vmatpush1.msra.mxu0 0.0
    %2177 = vmatprep.subr.mxu0 0.0
    %2178 = vmatpush1.msra.mxu0 0.0
    %2179 = vmatprep.subr.mxu0 0.0
    %2180 = vmatpush1.msra.mxu0 0.0
    %2181 = vmatprep.subr.mxu0 0.0
    %2182 = vmatpush1.msra.mxu0 0.0
    %2183 = vmatprep.subr.mxu0 0.0
    %2184 = vmatpush1.msra.mxu0 0.0
    %2185 = vmatprep.subr.mxu0 0.0
    %2186 = vmatpush1.msra.mxu0 0.0
    %2187 = vmatprep.subr.mxu0 0.0
    %2188 = vmatpush1.msra.mxu0 0.0
    %2189 = vmatprep.subr.mxu0 0.0
    %2190 = vmatpush1.msra.mxu0 0.0
    %2191 = vmatprep.subr.mxu0 0.0
    %2192 = vmatpush1.msra.mxu0 0.0
    %2193 = vmatprep.subr.mxu0 0.0
    %2194 = vmatpush1.msra.mxu0 0.0
    %2195 = vmatprep.subr.mxu0 0.0
    %2196 = vmatpush1.msra.mxu0 0.0
    %2197 = vmatprep.subr.mxu0 0.0
    %2198 = vmatpush1.msra.mxu0 0.0
    %2199 = vmatprep.subr.mxu0 0.0
    %2200 = vmatpush1.msra.mxu0 0.0
    %2201 = vmatprep.subr.mxu0 0.0
    %2202 = vmatpush1.msra.mxu0 0.0
    %2203 = vmatprep.subr.mxu0 0.0
    %2204 = vmatpush1.msra.mxu0 0.0
    %2205 = vmatprep.mubr.f32.mxu0 0.0
    %2206 = vmatmul.mubr.f32.gmra.mrb[0].mxu0 %v2068
    %v2207 = vpop.f32.mrb[0].mxu0
    %v2208 = vadd.f32 0.0, %v2207
    %v2209 = vpop.f32.mrb[0].mxu0
    %v2210 = vadd.f32 0.0, %v2209
    %2211 = vdwg.mxu0
    %v2216 = vrot.slane %v2137, 2
    %v2217 = vrot.slane %v2139, 2
    %v2218 = vrot.slane %v2208, 2
    %v2219 = vrot.slane %v2210, 2
    %v2224 = vadd.f32 %v187, %v2216
    %v2225 = vadd.f32 %v189, %v2217
    %v2226 = vadd.f32 %v264, %v2218
    %v2227 = vadd.f32 %v266, %v2219
    %v2228 = vxor.u32 %v2224, 2147483648
    %v2229 = vmul.f32 %v2228, 1.442695
    %v2230 = vpow.pop %v2229
    %v2231 = vadd.f32 %v2230, 1.0
    %v2232 = vrcp.pop %v2231
    %v2233 = vmul.f32 1.0, %v2232
    %v2234 = vxor.u32 %v2225, 2147483648
    %v2235 = vmul.f32 %v2234, 1.442695
    %v2236 = vpow.pop %v2235
    %v2237 = vadd.f32 %v2236, 1.0
    %v2238 = vrcp.pop %v2237
    %v2239 = vmul.f32 1.0, %v2238
    %v2240 = vtanh.pop %v2226
    %v2241 = vxor.u32 %v2227, 2147483648
    %v2242 = vmul.f32 %v2241, 1.442695
    %v2243 = vpow.pop %v2242
    %v2244 = vadd.f32 %v2243, 1.0
    %v2245 = vrcp.pop %v2244
    %v2246 = vmul.f32 1.0, %v2245
    %v2248 = vrot.slane %v1999, 6
    %v2250 = vmul.f32 %v2239, %v2248
    %v2251 = vmul.f32 %v2233, %v2240
    %v2252 = vadd.f32 %v2250, %v2251
    %v2253 = vtanh.pop %v2252
    %v2254 = vmul.f32 %v2246, %v2253
    %2255 = vst [vmem:[#allocation2 + $0x8] sm:$0xc0] %v2254
    %v2256 = vld [vmem:[#allocation2] sm:$0xff]
    %v2257 = vld [vmem:[#allocation2 + $0x8] sm:$0xff]
    %v2258 = vld [vmem:[%s4] sm:$0xff]
    %v2259 = vld [vmem:[%s4 + $0x8] sm:$0xff]
    %v2260 = vld [vmem:[%s4 + $0x10] sm:$0xff]
    %v2261 = vld [vmem:[%s4 + $0x18] sm:$0xff]
    %v2262 = vld [vmem:[%s4 + $0x20] sm:$0xff]
    %v2263 = vld [vmem:[%s4 + $0x28] sm:$0xff]
    %v2264 = vld [vmem:[%s4 + $0x30] sm:$0xff]
    %v2265 = vld [vmem:[%s4 + $0x38] sm:$0xff]
    %v2266 = vld [vmem:[%s4 + $0x40] sm:$0xff]
    %v2267 = vld [vmem:[%s4 + $0x48] sm:$0xff]
    %v2268 = vld [vmem:[%s4 + $0x50] sm:$0xff]
    %v2269 = vld [vmem:[%s4 + $0x58] sm:$0xff]
    %v2270 = vld [vmem:[%s4 + $0x60] sm:$0xff]
    %v2271 = vld [vmem:[%s4 + $0x68] sm:$0xff]
    %v2272 = vld [vmem:[%s4 + $0x70] sm:$0xff]
    %v2273 = vld [vmem:[%s4 + $0x78] sm:$0xff]
    %v2274 = vld [vmem:[%s5] sm:$0x1]
    %v2276 = vlaneseq
    %v2277 = vshrl.u32 %v2276, 7
    %v2278 = vsub.s32 0, %v2277
    %v2279 = vrot.slane %v2274, %v2278
    %2281 = vmatprep.subr.mxu0 0.0
    %2282 = vmatpush1.msra.mxu0 %v2258
    %2283 = vmatprep.subr.mxu0 0.0
    %2284 = vmatpush1.msra.mxu0 %v2259
    %2285 = vmatprep.subr.mxu0 0.0
    %2286 = vmatpush1.msra.mxu0 %v2260
    %2287 = vmatprep.subr.mxu0 0.0
    %2288 = vmatpush1.msra.mxu0 %v2261
    %2289 = vmatprep.subr.mxu0 0.0
    %2290 = vmatpush1.msra.mxu0 %v2262
    %2291 = vmatprep.subr.mxu0 0.0
    %2292 = vmatpush1.msra.mxu0 %v2263
    %2293 = vmatprep.subr.mxu0 0.0
    %2294 = vmatpush1.msra.mxu0 %v2264
    %2295 = vmatprep.subr.mxu0 0.0
    %2296 = vmatpush1.msra.mxu0 %v2265
    %2297 = vmatprep.subr.mxu0 0.0
    %2298 = vmatpush1.msra.mxu0 %v2266
    %2299 = vmatprep.subr.mxu0 0.0
    %2300 = vmatpush1.msra.mxu0 %v2267
    %2301 = vmatprep.subr.mxu0 0.0
    %2302 = vmatpush1.msra.mxu0 %v2268
    %2303 = vmatprep.subr.mxu0 0.0
    %2304 = vmatpush1.msra.mxu0 %v2269
    %2305 = vmatprep.subr.mxu0 0.0
    %2306 = vmatpush1.msra.mxu0 %v2270
    %2307 = vmatprep.subr.mxu0 0.0
    %2308 = vmatpush1.msra.mxu0 %v2271
    %2309 = vmatprep.subr.mxu0 0.0
    %2310 = vmatpush1.msra.mxu0 %v2272
    %2311 = vmatprep.subr.mxu0 0.0
    %2312 = vmatpush1.msra.mxu0 %v2273
    %2313 = vmatprep.subr.mxu0 0.0
    %2314 = vmatpush1.msra.mxu0 0.0
    %2315 = vmatprep.subr.mxu0 0.0
    %2316 = vmatpush1.msra.mxu0 0.0
    %2317 = vmatprep.subr.mxu0 0.0
    %2318 = vmatpush1.msra.mxu0 0.0
    %2319 = vmatprep.subr.mxu0 0.0
    %2320 = vmatpush1.msra.mxu0 0.0
    %2321 = vmatprep.subr.mxu0 0.0
    %2322 = vmatpush1.msra.mxu0 0.0
    %2323 = vmatprep.subr.mxu0 0.0
    %2324 = vmatpush1.msra.mxu0 0.0
    %2325 = vmatprep.subr.mxu0 0.0
    %2326 = vmatpush1.msra.mxu0 0.0
    %2327 = vmatprep.subr.mxu0 0.0
    %2328 = vmatpush1.msra.mxu0 0.0
    %2329 = vmatprep.subr.mxu0 0.0
    %2330 = vmatpush1.msra.mxu0 0.0
    %2331 = vmatprep.subr.mxu0 0.0
    %2332 = vmatpush1.msra.mxu0 0.0
    %2333 = vmatprep.subr.mxu0 0.0
    %2334 = vmatpush1.msra.mxu0 0.0
    %2335 = vmatprep.subr.mxu0 0.0
    %2336 = vmatpush1.msra.mxu0 0.0
    %2337 = vmatprep.subr.mxu0 0.0
    %2338 = vmatpush1.msra.mxu0 0.0
    %2339 = vmatprep.subr.mxu0 0.0
    %2340 = vmatpush1.msra.mxu0 0.0
    %2341 = vmatprep.subr.mxu0 0.0
    %2342 = vmatpush1.msra.mxu0 0.0
    %2343 = vmatprep.subr.mxu0 0.0
    %2344 = vmatpush1.msra.mxu0 0.0
    %2345 = vmatprep.mubr.f32.mxu0 0.0
    %2346 = vmatmul.mubr.f32.gmra.mrb[0].mxu0 %v2256
    %v2347 = vpop.f32.mrb[0].mxu0
    %v2348 = vadd.f32 %v2279, %v2347
    %v2349 = vpop.f32.mrb[0].mxu0
    %2350 = vmatprep.mubr.f32.mxu0 0.0
    %2351 = vmatmul.mubr.f32.gmra.mrb[0].mxu0 %v2257
    %v2352 = vpop.f32.mrb[0].mxu0
    %v2353 = vadd.f32 %v2279, %v2352
    %v2354 = vpop.f32.mrb[0].mxu0
    %2355 = vdwg.mxu0
    %vm2356 = vcmask 64512
    %2357 = vst.msk [vmem:[%s6] sm:$0xff] %vm2356, %v2348
    %2358 = vst.msk [vmem:[%s6 + $0x8] sm:$0xff] %vm2356, %v2353
    // Predicated region
    $region34: #{tpu_custom_call.1} parent=1 // pred_check
      _
    $region35: #{tpu_custom_call.1} parent=1 // pred_check_branch
      %2360 = sbr.rel (0) target = $region37
    $region36: #{tpu_custom_call.1} parent=1 // pred_region
      _
    $region37: #{tpu_custom_call.1} parent=1 // pred_fallthru
      _
    // Predicated region
    $region38: #{tpu_custom_call.1} parent=1 // pred_check
      _
    $region39: #{tpu_custom_call.1} parent=1 // pred_check_branch
      %2362 = sbr.rel (0) target = $region41
    $region40: #{tpu_custom_call.1} parent=1 // pred_region
      _
    $region41: #{tpu_custom_call.1} parent=1 // pred_fallthru
      _
    %2363 = vsyncpa [#allocation4], 1
    %2364 = vsyncpa [#allocation6], 1

</llo_original>
